<compile_context>
chip_gen: v6e
topology: v6e:2x2x1
jax: 0.10.0
libtpu: 0.0.40
codegen_flags: <defaults>
</compile_context>

<pallas_src>
import jax
import jax.numpy as jnp
import numpy as np
from jax import lax
from jax.experimental import pallas as pl
from jax.experimental.pallas import tpu as pltpu

PAD = 3            # ReplicationPad1d((3, 3)) for kernel_size=5, dilation=1
K1, K2 = 5, 3      # conv kernel sizes (first conv=5, second conv=3)
NEG_SLOPE = 0.01   # LeakyReLU negative slope

# branch indices into the stacked parameter tensors
PHI, PSI, U, P = 0, 1, 2, 3


def _interactor_kernel(x_ref, w1_ref, b1_ref, w2_ref, b2_ref,
                       even_ref, odd_ref, scr_ref):
    C2, Wv = x_ref.shape            # (2*C, TB*Lp) padded-segment operand
    C = C2 // 2
    TB, _, L = even_ref.shape
    Lp = L + 2 * PAD
    assert TB * Lp == Wv
    N1 = Wv - (K1 - 1)              # conv-1 output width
    N2 = N1 - (K2 - 1)              # conv-2 output width (= Wv - 2*PAD)
    cdtype = w1_ref.dtype           # MXU operand dtype (bf16 by default)
    sdtype = scr_ref.dtype

    def double_conv(src_ref, s):
        """conv5 -> bias -> LeakyReLU -> conv3 -> bias -> tanh for both fused
        branches at once; each conv = K accumulated matmuls on lane-shifted
        windows of the padded operand (time on lanes)."""
        acc = jnp.dot(w1_ref[s, 0], src_ref[:, pl.ds(0, N1)],
                      preferred_element_type=jnp.float32)
        for k in range(1, K1):
            acc = acc + jnp.dot(w1_ref[s, k], src_ref[:, pl.ds(k, N1)],
                                preferred_element_type=jnp.float32)
        h = acc + b1_ref[s]                              # (2*CH, N1) + (2*CH, 1)
        h = jnp.where(h > 0, h, NEG_SLOPE * h)           # LeakyReLU
        # TODO(synk): nn.Dropout treated as identity (eval-mode semantics).
        hc = h.astype(cdtype)
        acc2 = jnp.dot(w2_ref[s, 0], hc[:, 0:N2],
                       preferred_element_type=jnp.float32)
        for k in range(1, K2):
            acc2 = acc2 + jnp.dot(w2_ref[s, k], hc[:, k:k + N2],
                                  preferred_element_type=jnp.float32)
        return jnp.tanh(acc2 + b2_ref[s])                # (2*C, N2), f32

    # ---- stage 1: rows [0:C] of o1 = psi(x_odd), rows [C:2C] = phi(x_even)
    # (the branch swap is baked into the anti-diagonal conv-2 weight blocks).
    e1 = jnp.exp(double_conv(x_ref, 0))
    # valid-data-aligned view of the padded input (+PAD lane shift):
    # rows [0:C] = x_even, rows [C:2C] = x_odd at time t on lane b*Lp + t.
    xs = x_ref[:, pl.ds(PAD, N2)].astype(jnp.float32)
    cd = xs * e1                    # rows [0:C] = c = xe*exp(psi), [C:2C] = d = xo*exp(phi)

    # ---- stage-2 operand: same padded-segment layout; one full-width store,
    # then patch the 2*PAD replication-pad lanes of each segment.
    scr_ref[:, pl.ds(PAD, N2)] = cd.astype(sdtype)
    for b in range(TB):
        lo = b * Lp
        scr_ref[:, pl.ds(lo, PAD)] = jnp.broadcast_to(
            cd[:, lo:lo + 1], (C2, PAD)).astype(sdtype)
        scr_ref[:, pl.ds(lo + PAD + L, PAD)] = jnp.broadcast_to(
            cd[:, lo + L - 1:lo + L], (C2, PAD)).astype(sdtype)

    # ---- stage 2: rows [0:C] of o2 = U(d), rows [C:2C] = P(c).
    o2 = double_conv(scr_ref, 1)

    # ---- residual update; c/d re-read from scratch (short live ranges),
    # outputs stored lane-dense directly in (B, C, L) layout.
    for b in range(TB):
        lo = b * Lp
        cd_b = scr_ref[:, pl.ds(lo + PAD, L)].astype(jnp.float32)
        even_ref[b] = cd_b[0:C] + o2[0:C, lo:lo + L]     # x_even_update = c + U(d)
        odd_ref[b] = cd_b[C:C2] - o2[C:C2, lo:lo + L]    # x_odd_update  = d - P(c)


def interactor_level_forward(x, params, *, compute_dtype=jnp.bfloat16,
                             batch_block=None):
    """x: (B, T, C) = (batch, time, in_planes), same as the PyTorch input.
    Returns (x_even_update, x_odd_update), each (B, C, L) like the module."""
    B, T, C = x.shape
    L = T // 2
    assert T == 2 * L and L >= 1, "SCINet splitting assumes an even sequence length"
    w1, b1, w2, b2 = params["w1"], params["b1"], params["w2"], params["b2"]
    CH = w1.shape[1]
    Lp = L + 2 * PAD

    # ---- per-tap branch-fused weights (built once; tiny) -------------------
    def diag(wa, wb):                      # (O, I, K) x2 -> (K, 2O, 2I) block-diag
        O, I, K = wa.shape
        z = jnp.zeros((K, 2 * O, 2 * I), jnp.float32)
        z = z.at[:, :O, :I].set(jnp.moveaxis(wa, 2, 0))
        z = z.at[:, O:, I:].set(jnp.moveaxis(wb, 2, 0))
        return z

    def anti(wa, wb):                      # anti-diagonal blocks (branch swap for free)
        O, I, K = wa.shape
        z = jnp.zeros((K, 2 * O, 2 * I), jnp.float32)
        z = z.at[:, :O, I:].set(jnp.moveaxis(wa, 2, 0))
        z = z.at[:, O:, :I].set(jnp.moveaxis(wb, 2, 0))
        return z

    # stage 0 inputs: rows [0:C]=x_even, [C:2C]=x_odd; outputs [0:C]=psi, [C:2C]=phi
    # stage 1 inputs: rows [0:C]=c,      [C:2C]=d;     outputs [0:C]=U(d), [C:2C]=P(c)
    w1f = jnp.stack([diag(w1[PHI], w1[PSI]),
                     diag(w1[P], w1[U])]).astype(compute_dtype)      # (2, K1, 2CH, 2C)
    w2f = jnp.stack([anti(w2[PSI], w2[PHI]),
                     anti(w2[U], w2[P])]).astype(compute_dtype)      # (2, K2, 2C, 2CH)
    b1f = jnp.stack([jnp.concatenate([b1[PHI], b1[PSI]]),
                     jnp.concatenate([b1[P], b1[U]])])[:, :, None].astype(jnp.float32)
    b2f = jnp.stack([jnp.concatenate([b2[PSI], b2[PHI]]),
                     jnp.concatenate([b2[U], b2[P]])])[:, :, None].astype(jnp.float32)

    # ---- batch-block size: moderate lane extent, >=2 grid steps when possible
    if batch_block is None:
        tb = max(1, min(B, 4096 // Lp))
        if B >= 2:
            tb = max(1, min(tb, B // 2))   # keep both v7x TensorCores busy
        while B % tb:
            tb -= 1
        TB = tb
    else:
        TB = batch_block
        assert B % TB == 0
    Wv = TB * Lp
    G = B // TB

    # ---- even/odd split + channel-major + ReplicationPad1d + segment layout,
    # all one XLA copy in the wrapper (no strided gathers in the kernel).
    xeo = x.reshape(B, L, 2, C).transpose(0, 2, 3, 1).reshape(B, 2 * C, L)
    xpad = jnp.pad(xeo, ((0, 0), (0, 0), (PAD, PAD)), mode="edge")      # (B, 2C, Lp)
    xblk = xpad.reshape(G, TB, 2 * C, Lp).transpose(0, 2, 1, 3).reshape(G, 2 * C, Wv)
    xblk = xblk.astype(compute_dtype)

    grid_spec = pltpu.PrefetchScalarGridSpec(
        num_scalar_prefetch=0,
        grid=(G,),
        in_specs=[
            pl.BlockSpec((None, 2 * C, Wv), lambda i: (i, 0, 0)),
            pl.BlockSpec(w1f.shape, lambda i: (0, 0, 0, 0)),
            pl.BlockSpec(b1f.shape, lambda i: (0, 0, 0)),
            pl.BlockSpec(w2f.shape, lambda i: (0, 0, 0, 0)),
            pl.BlockSpec(b2f.shape, lambda i: (0, 0, 0)),
        ],
        out_specs=[
            pl.BlockSpec((TB, C, L), lambda i: (i, 0, 0)),
            pl.BlockSpec((TB, C, L), lambda i: (i, 0, 0)),
        ],
        scratch_shapes=[
            pltpu.VMEM((2 * C, Wv), compute_dtype),   # stage-2 padded operand
        ],
    )

    even_u, odd_u = pl.pallas_call(
        _interactor_kernel,
        out_shape=(jax.ShapeDtypeStruct((B, C, L), jnp.float32),
                   jax.ShapeDtypeStruct((B, C, L), jnp.float32)),
        grid_spec=grid_spec,
        compiler_params=pltpu.CompilerParams(
            dimension_semantics=("parallel",)),
    )(xblk, w1f, b1f, w2f, b2f)
    return even_u, odd_u


# ----------------------------- parameter init -------------------------------
def init_params(key, C, hidden):
    CH = C * hidden
    keys = jax.random.split(key, 16)

    def unif(k, shape, fan_in):
        bound = 1.0 / np.sqrt(fan_in)
        return jax.random.uniform(k, shape, jnp.float32, -bound, bound)

    w1 = jnp.stack([unif(keys[4 * i + 0], (CH, C, K1), C * K1) for i in range(4)])
    b1 = jnp.stack([unif(keys[4 * i + 1], (CH,), C * K1) for i in range(4)])
    w2 = jnp.stack([unif(keys[4 * i + 2], (C, CH, K2), CH * K2) for i in range(4)])
    b2 = jnp.stack([unif(keys[4 * i + 3], (C,), CH * K2) for i in range(4)])
    return {"w1": w1, "b1": b1, "w2": w2, "b2": b2}


# ------------------------- pure-JAX reference (check) -----------------------
def _branch_ref(x, w, b, w2, b2, cast_dtype):
    # x: (B, C, L); cast_dtype emulates the kernel's MXU operand precision.
    xp = jnp.pad(x, ((0, 0), (0, 0), (PAD, PAD)), mode="edge")
    h = lax.conv_general_dilated(
        xp.astype(cast_dtype), w.astype(cast_dtype), (1,), "VALID",
        dimension_numbers=("NCH", "OIH", "NCH"),
        preferred_element_type=jnp.float32)
    h = h + b[None, :, None]
    h = jnp.where(h > 0, h, NEG_SLOPE * h)
    o = lax.conv_general_dilated(
        h.astype(cast_dtype), w2.astype(cast_dtype), (1,), "VALID",
        dimension_numbers=("NCH", "OIH", "NCH"),
        preferred_element_type=jnp.float32)
    return jnp.tanh(o + b2[None, :, None])


def interactor_level_ref(x, params, cast_dtype=jnp.float32):
    """Mirrors the kernel's numerics: with cast_dtype=f32 it is exactly the
    PyTorch math; with bf16 it applies the same operand roundings."""
    B, T, C = x.shape
    L = T // 2
    q = lambda a: a.astype(cast_dtype).astype(jnp.float32)
    xe = q(jnp.transpose(x[:, 0:2 * L:2, :], (0, 2, 1)))   # (B, C, L)
    xo = q(jnp.transpose(x[:, 1:2 * L:2, :], (0, 2, 1)))
    w1, b1, w2, b2 = params["w1"], params["b1"], params["w2"], params["b2"]
    d = q(xo * jnp.exp(_branch_ref(xe, w1[PHI], b1[PHI], w2[PHI], b2[PHI], cast_dtype)))
    c = q(xe * jnp.exp(_branch_ref(xo, w1[PSI], b1[PSI], w2[PSI], b2[PSI], cast_dtype)))
    even_u = c + _branch_ref(d, w1[U], b1[U], w2[U], b2[U], cast_dtype)
    odd_u = d - _branch_ref(c, w1[P], b1[P], w2[P], b2[P], cast_dtype)
    return even_u, odd_u


if __name__ == "__main__":
    key = jax.random.PRNGKey(0)
    kx, kp, kx2 = jax.random.split(key, 3)

    # in_planes=4, kernel=5, dropout(ignored), groups=1, hidden_size=2, INN=True
    B, T, C, hidden = 2, 16, 4, 2
    x = jax.random.normal(kx, (B, T, C), jnp.float32)
    params = init_params(kp, C, hidden)

    # f32 compute path: tight structural check against the exact reference
    ev32, od32 = interactor_level_forward(x, params, compute_dtype=jnp.float32)
    jax.block_until_ready((ev32, od32))
    ref_e, ref_o = interactor_level_ref(x, params, cast_dtype=jnp.float32)
    assert np.allclose(np.asarray(ev32), np.asarray(ref_e), rtol=2e-3, atol=2e-3)
    assert np.allclose(np.asarray(od32), np.asarray(ref_o), rtol=2e-3, atol=2e-3)

    # default bf16-operand path vs a bf16-operand reference
    ev16, od16 = interactor_level_forward(x, params)
    jax.block_until_ready((ev16, od16))
    ref_e16, ref_o16 = interactor_level_ref(x, params, cast_dtype=jnp.bfloat16)
    assert np.allclose(np.asarray(ev16), np.asarray(ref_e16), rtol=2e-2, atol=2e-2)
    assert np.allclose(np.asarray(od16), np.asarray(ref_o16), rtol=2e-2, atol=2e-2)

    # multi-batch-per-block path (TB=2 -> two padded segments per grid step)
    x4 = jax.random.normal(kx2, (4, T, C), jnp.float32)
    ev4, od4 = interactor_level_forward(x4, params, compute_dtype=jnp.float32,
                                        batch_block=2)
    jax.block_until_ready((ev4, od4))
    r4e, r4o = interactor_level_ref(x4, params, cast_dtype=jnp.float32)
    assert np.allclose(np.asarray(ev4), np.asarray(r4e), rtol=2e-3, atol=2e-3)
    assert np.allclose(np.asarray(od4), np.asarray(r4o), rtol=2e-3, atol=2e-3)

    print("KERNEL_OK")
</pallas_src>

<mosaic_0001>
module attributes {stable_mosaic.version = 11 : i64} {
  func.func @_interactor_kernel(%arg0: i32, %arg1: memref<1x8x14xf32, #tpu.memory_space<vmem>>, %arg2: memref<2x5x16x8xf32, #tpu.memory_space<vmem>>, %arg3: memref<2x16x1xf32, #tpu.memory_space<vmem>>, %arg4: memref<2x3x8x16xf32, #tpu.memory_space<vmem>>, %arg5: memref<2x8x1xf32, #tpu.memory_space<vmem>>, %arg6: memref<1x4x8xf32, #tpu.memory_space<vmem>>, %arg7: memref<1x4x8xf32, #tpu.memory_space<vmem>>, %arg8: memref<8x14xf32, #tpu.memory_space<vmem>>) attributes {dimension_semantics = [#tpu.dimension_semantics<parallel>], iteration_bounds = array<i64: 2>, scalar_prefetch = 0 : i64, scratch_operands = 1 : i64, tpu.core_type = #tpu.core_type<tc>, window_params = [{transform_indices = @transform_0, window_bounds = array<i64: 1, 8, 14>}, {pipeline_mode = #tpu.pipeline_mode<synchronous>, transform_indices = @transform_1, window_bounds = array<i64: 2, 5, 16, 8>}, {pipeline_mode = #tpu.pipeline_mode<synchronous>, transform_indices = @transform_2, window_bounds = array<i64: 2, 16, 1>}, {pipeline_mode = #tpu.pipeline_mode<synchronous>, transform_indices = @transform_3, window_bounds = array<i64: 2, 3, 8, 16>}, {pipeline_mode = #tpu.pipeline_mode<synchronous>, transform_indices = @transform_4, window_bounds = array<i64: 2, 8, 1>}, {transform_indices = @transform_5, window_bounds = array<i64: 1, 4, 8>}, {transform_indices = @transform_6, window_bounds = array<i64: 1, 4, 8>}]} {
    %c0 = arith.constant 0 : index
    %c0_0 = arith.constant 0 : index
    %c0_1 = arith.constant 0 : index
    %c0_2 = arith.constant 0 : index
    %0 = vector.load %arg2[%c0, %c0_0, %c0_1, %c0_2] : memref<2x5x16x8xf32, #tpu.memory_space<vmem>>, vector<1x1x16x8xf32>
    %1 = vector.shape_cast %0 : vector<1x1x16x8xf32> to vector<16x8xf32>
    %c0_3 = arith.constant 0 : index
    %c0_4 = arith.constant 0 : index
    %c0_5 = arith.constant 0 : index
    %2 = vector.load %arg1[%c0_3, %c0_4, %c0_5] : memref<1x8x14xf32, #tpu.memory_space<vmem>>, vector<1x8x10xf32>
    %3 = vector.shape_cast %2 : vector<1x8x10xf32> to vector<8x10xf32>
    %cst = arith.constant dense<0.000000e+00> : vector<16x10xf32>
    %4 = tpu.matmul %1, %3, %cst {dimension_numbers = #tpu.dot_dimension_numbers<[1], [0], [0], [1], [0, 0, 1, 1], [], []>} : vector<16x8xf32>, vector<8x10xf32>, vector<16x10xf32> -> vector<16x10xf32>
    %c0_6 = arith.constant 0 : index
    %c1 = arith.constant 1 : index
    %c0_7 = arith.constant 0 : index
    %c0_8 = arith.constant 0 : index
    %5 = vector.load %arg2[%c0_6, %c1, %c0_7, %c0_8] : memref<2x5x16x8xf32, #tpu.memory_space<vmem>>, vector<1x1x16x8xf32>
    %6 = vector.shape_cast %5 : vector<1x1x16x8xf32> to vector<16x8xf32>
    %c0_9 = arith.constant 0 : index
    %c0_10 = arith.constant 0 : index
    %c1_11 = arith.constant 1 : index
    %7 = vector.load %arg1[%c0_9, %c0_10, %c1_11] : memref<1x8x14xf32, #tpu.memory_space<vmem>>, vector<1x8x10xf32>
    %8 = vector.shape_cast %7 : vector<1x8x10xf32> to vector<8x10xf32>
    %cst_12 = arith.constant dense<0.000000e+00> : vector<16x10xf32>
    %9 = tpu.matmul %6, %8, %cst_12 {dimension_numbers = #tpu.dot_dimension_numbers<[1], [0], [0], [1], [0, 0, 1, 1], [], []>} : vector<16x8xf32>, vector<8x10xf32>, vector<16x10xf32> -> vector<16x10xf32>
    %10 = arith.addf %4, %9 : vector<16x10xf32>
    %c0_13 = arith.constant 0 : index
    %c2 = arith.constant 2 : index
    %c0_14 = arith.constant 0 : index
    %c0_15 = arith.constant 0 : index
    %11 = vector.load %arg2[%c0_13, %c2, %c0_14, %c0_15] : memref<2x5x16x8xf32, #tpu.memory_space<vmem>>, vector<1x1x16x8xf32>
    %12 = vector.shape_cast %11 : vector<1x1x16x8xf32> to vector<16x8xf32>
    %c0_16 = arith.constant 0 : index
    %c0_17 = arith.constant 0 : index
    %c2_18 = arith.constant 2 : index
    %13 = vector.load %arg1[%c0_16, %c0_17, %c2_18] : memref<1x8x14xf32, #tpu.memory_space<vmem>>, vector<1x8x10xf32>
    %14 = vector.shape_cast %13 : vector<1x8x10xf32> to vector<8x10xf32>
    %cst_19 = arith.constant dense<0.000000e+00> : vector<16x10xf32>
    %15 = tpu.matmul %12, %14, %cst_19 {dimension_numbers = #tpu.dot_dimension_numbers<[1], [0], [0], [1], [0, 0, 1, 1], [], []>} : vector<16x8xf32>, vector<8x10xf32>, vector<16x10xf32> -> vector<16x10xf32>
    %16 = arith.addf %10, %15 : vector<16x10xf32>
    %c0_20 = arith.constant 0 : index
    %c3 = arith.constant 3 : index
    %c0_21 = arith.constant 0 : index
    %c0_22 = arith.constant 0 : index
    %17 = vector.load %arg2[%c0_20, %c3, %c0_21, %c0_22] : memref<2x5x16x8xf32, #tpu.memory_space<vmem>>, vector<1x1x16x8xf32>
    %18 = vector.shape_cast %17 : vector<1x1x16x8xf32> to vector<16x8xf32>
    %c0_23 = arith.constant 0 : index
    %c0_24 = arith.constant 0 : index
    %c3_25 = arith.constant 3 : index
    %19 = vector.load %arg1[%c0_23, %c0_24, %c3_25] : memref<1x8x14xf32, #tpu.memory_space<vmem>>, vector<1x8x10xf32>
    %20 = vector.shape_cast %19 : vector<1x8x10xf32> to vector<8x10xf32>
    %cst_26 = arith.constant dense<0.000000e+00> : vector<16x10xf32>
    %21 = tpu.matmul %18, %20, %cst_26 {dimension_numbers = #tpu.dot_dimension_numbers<[1], [0], [0], [1], [0, 0, 1, 1], [], []>} : vector<16x8xf32>, vector<8x10xf32>, vector<16x10xf32> -> vector<16x10xf32>
    %22 = arith.addf %16, %21 : vector<16x10xf32>
    %c0_27 = arith.constant 0 : index
    %c4 = arith.constant 4 : index
    %c0_28 = arith.constant 0 : index
    %c0_29 = arith.constant 0 : index
    %23 = vector.load %arg2[%c0_27, %c4, %c0_28, %c0_29] : memref<2x5x16x8xf32, #tpu.memory_space<vmem>>, vector<1x1x16x8xf32>
    %24 = vector.shape_cast %23 : vector<1x1x16x8xf32> to vector<16x8xf32>
    %c0_30 = arith.constant 0 : index
    %c0_31 = arith.constant 0 : index
    %c4_32 = arith.constant 4 : index
    %25 = vector.load %arg1[%c0_30, %c0_31, %c4_32] : memref<1x8x14xf32, #tpu.memory_space<vmem>>, vector<1x8x10xf32>
    %26 = vector.shape_cast %25 : vector<1x8x10xf32> to vector<8x10xf32>
    %cst_33 = arith.constant dense<0.000000e+00> : vector<16x10xf32>
    %27 = tpu.matmul %24, %26, %cst_33 {dimension_numbers = #tpu.dot_dimension_numbers<[1], [0], [0], [1], [0, 0, 1, 1], [], []>} : vector<16x8xf32>, vector<8x10xf32>, vector<16x10xf32> -> vector<16x10xf32>
    %28 = arith.addf %22, %27 : vector<16x10xf32>
    %c0_34 = arith.constant 0 : index
    %c0_35 = arith.constant 0 : index
    %c0_36 = arith.constant 0 : index
    %29 = vector.load %arg3[%c0_34, %c0_35, %c0_36] : memref<2x16x1xf32, #tpu.memory_space<vmem>>, vector<1x16x1xf32>
    %30 = vector.shape_cast %29 : vector<1x16x1xf32> to vector<16x1xf32>
    %31 = vector.broadcast %30 : vector<16x1xf32> to vector<16x10xf32>
    %32 = arith.addf %28, %31 : vector<16x10xf32>
    %cst_37 = arith.constant 0.000000e+00 : f32
    %33 = vector.broadcast %cst_37 : f32 to vector<16x10xf32>
    %34 = arith.cmpf ogt, %32, %33 : vector<16x10xf32>
    %cst_38 = arith.constant 0.00999999977 : f32
    %35 = vector.broadcast %cst_38 : f32 to vector<16x10xf32>
    %36 = arith.mulf %35, %32 : vector<16x10xf32>
    %37 = arith.select %34, %32, %36 : vector<16x10xi1>, vector<16x10xf32>
    %c0_39 = arith.constant 0 : index
    %c0_40 = arith.constant 0 : index
    %c0_41 = arith.constant 0 : index
    %c0_42 = arith.constant 0 : index
    %38 = vector.load %arg4[%c0_39, %c0_40, %c0_41, %c0_42] : memref<2x3x8x16xf32, #tpu.memory_space<vmem>>, vector<1x1x8x16xf32>
    %39 = vector.shape_cast %38 : vector<1x1x8x16xf32> to vector<8x16xf32>
    %40 = vector.extract_strided_slice %37 {offsets = [0, 0], sizes = [16, 8], strides = [1, 1]} : vector<16x10xf32> to vector<16x8xf32>
    %cst_43 = arith.constant dense<0.000000e+00> : vector<8x8xf32>
    %41 = tpu.matmul %39, %40, %cst_43 {dimension_numbers = #tpu.dot_dimension_numbers<[1], [0], [0], [1], [0, 0, 1, 1], [], []>} : vector<8x16xf32>, vector<16x8xf32>, vector<8x8xf32> -> vector<8x8xf32>
    %c0_44 = arith.constant 0 : index
    %c1_45 = arith.constant 1 : index
    %c0_46 = arith.constant 0 : index
    %c0_47 = arith.constant 0 : index
    %42 = vector.load %arg4[%c0_44, %c1_45, %c0_46, %c0_47] : memref<2x3x8x16xf32, #tpu.memory_space<vmem>>, vector<1x1x8x16xf32>
    %43 = vector.shape_cast %42 : vector<1x1x8x16xf32> to vector<8x16xf32>
    %44 = vector.extract_strided_slice %37 {offsets = [0, 1], sizes = [16, 8], strides = [1, 1]} : vector<16x10xf32> to vector<16x8xf32>
    %cst_48 = arith.constant dense<0.000000e+00> : vector<8x8xf32>
    %45 = tpu.matmul %43, %44, %cst_48 {dimension_numbers = #tpu.dot_dimension_numbers<[1], [0], [0], [1], [0, 0, 1, 1], [], []>} : vector<8x16xf32>, vector<16x8xf32>, vector<8x8xf32> -> vector<8x8xf32>
    %46 = arith.addf %41, %45 : vector<8x8xf32>
    %c0_49 = arith.constant 0 : index
    %c2_50 = arith.constant 2 : index
    %c0_51 = arith.constant 0 : index
    %c0_52 = arith.constant 0 : index
    %47 = vector.load %arg4[%c0_49, %c2_50, %c0_51, %c0_52] : memref<2x3x8x16xf32, #tpu.memory_space<vmem>>, vector<1x1x8x16xf32>
    %48 = vector.shape_cast %47 : vector<1x1x8x16xf32> to vector<8x16xf32>
    %49 = vector.extract_strided_slice %37 {offsets = [0, 2], sizes = [16, 8], strides = [1, 1]} : vector<16x10xf32> to vector<16x8xf32>
    %cst_53 = arith.constant dense<0.000000e+00> : vector<8x8xf32>
    %50 = tpu.matmul %48, %49, %cst_53 {dimension_numbers = #tpu.dot_dimension_numbers<[1], [0], [0], [1], [0, 0, 1, 1], [], []>} : vector<8x16xf32>, vector<16x8xf32>, vector<8x8xf32> -> vector<8x8xf32>
    %51 = arith.addf %46, %50 : vector<8x8xf32>
    %c0_54 = arith.constant 0 : index
    %c0_55 = arith.constant 0 : index
    %c0_56 = arith.constant 0 : index
    %52 = vector.load %arg5[%c0_54, %c0_55, %c0_56] : memref<2x8x1xf32, #tpu.memory_space<vmem>>, vector<1x8x1xf32>
    %53 = vector.shape_cast %52 : vector<1x8x1xf32> to vector<8x1xf32>
    %54 = vector.broadcast %53 : vector<8x1xf32> to vector<8x8xf32>
    %55 = arith.addf %51, %54 : vector<8x8xf32>
    %56 = math.tanh %55 : vector<8x8xf32>
    %57 = math.exp %56 : vector<8x8xf32>
    %c0_57 = arith.constant 0 : index
    %c0_58 = arith.constant 0 : index
    %c3_59 = arith.constant 3 : index
    %58 = vector.load %arg1[%c0_57, %c0_58, %c3_59] : memref<1x8x14xf32, #tpu.memory_space<vmem>>, vector<1x8x8xf32>
    %59 = vector.shape_cast %58 : vector<1x8x8xf32> to vector<8x8xf32>
    %60 = arith.mulf %59, %57 : vector<8x8xf32>
    %c0_60 = arith.constant 0 : index
    %c3_61 = arith.constant 3 : index
    %61 = vector.load %arg8[%c0_60, %c3_61] : memref<8x14xf32, #tpu.memory_space<vmem>>, vector<8x8xf32>
    tpu.vector_store %arg8[%c0_60, %c3_61], %60 {strides = array<i32>} : memref<8x14xf32, #tpu.memory_space<vmem>>, vector<8x8xf32>,
    %62 = vector.extract_strided_slice %60 {offsets = [0, 0], sizes = [8, 1], strides = [1, 1]} : vector<8x8xf32> to vector<8x1xf32>
    %63 = vector.shape_cast %62 : vector<8x1xf32> to vector<8x1xf32>
    %64 = vector.broadcast %63 : vector<8x1xf32> to vector<8x3xf32>
    %c0_62 = arith.constant 0 : index
    %c0_63 = arith.constant 0 : index
    %65 = vector.load %arg8[%c0_62, %c0_63] : memref<8x14xf32, #tpu.memory_space<vmem>>, vector<8x3xf32>
    tpu.vector_store %arg8[%c0_62, %c0_63], %64 {strides = array<i32>} : memref<8x14xf32, #tpu.memory_space<vmem>>, vector<8x3xf32>,
    %66 = vector.extract_strided_slice %60 {offsets = [0, 7], sizes = [8, 1], strides = [1, 1]} : vector<8x8xf32> to vector<8x1xf32>
    %67 = vector.shape_cast %66 : vector<8x1xf32> to vector<8x1xf32>
    %68 = vector.broadcast %67 : vector<8x1xf32> to vector<8x3xf32>
    %c0_64 = arith.constant 0 : index
    %c11 = arith.constant 11 : index
    %69 = vector.load %arg8[%c0_64, %c11] : memref<8x14xf32, #tpu.memory_space<vmem>>, vector<8x3xf32>
    tpu.vector_store %arg8[%c0_64, %c11], %68 {strides = array<i32>} : memref<8x14xf32, #tpu.memory_space<vmem>>, vector<8x3xf32>,
    %c1_65 = arith.constant 1 : index
    %c0_66 = arith.constant 0 : index
    %c0_67 = arith.constant 0 : index
    %c0_68 = arith.constant 0 : index
    %70 = vector.load %arg2[%c1_65, %c0_66, %c0_67, %c0_68] : memref<2x5x16x8xf32, #tpu.memory_space<vmem>>, vector<1x1x16x8xf32>
    %71 = vector.shape_cast %70 : vector<1x1x16x8xf32> to vector<16x8xf32>
    %c0_69 = arith.constant 0 : index
    %c0_70 = arith.constant 0 : index
    %72 = vector.load %arg8[%c0_69, %c0_70] : memref<8x14xf32, #tpu.memory_space<vmem>>, vector<8x10xf32>
    %cst_71 = arith.constant dense<0.000000e+00> : vector<16x10xf32>
    %73 = tpu.matmul %71, %72, %cst_71 {dimension_numbers = #tpu.dot_dimension_numbers<[1], [0], [0], [1], [0, 0, 1, 1], [], []>} : vector<16x8xf32>, vector<8x10xf32>, vector<16x10xf32> -> vector<16x10xf32>
    %c1_72 = arith.constant 1 : index
    %c1_73 = arith.constant 1 : index
    %c0_74 = arith.constant 0 : index
    %c0_75 = arith.constant 0 : index
    %74 = vector.load %arg2[%c1_72, %c1_73, %c0_74, %c0_75] : memref<2x5x16x8xf32, #tpu.memory_space<vmem>>, vector<1x1x16x8xf32>
    %75 = vector.shape_cast %74 : vector<1x1x16x8xf32> to vector<16x8xf32>
    %c0_76 = arith.constant 0 : index
    %c1_77 = arith.constant 1 : index
    %76 = vector.load %arg8[%c0_76, %c1_77] : memref<8x14xf32, #tpu.memory_space<vmem>>, vector<8x10xf32>
    %cst_78 = arith.constant dense<0.000000e+00> : vector<16x10xf32>
    %77 = tpu.matmul %75, %76, %cst_78 {dimension_numbers = #tpu.dot_dimension_numbers<[1], [0], [0], [1], [0, 0, 1, 1], [], []>} : vector<16x8xf32>, vector<8x10xf32>, vector<16x10xf32> -> vector<16x10xf32>
    %78 = arith.addf %73, %77 : vector<16x10xf32>
    %c1_79 = arith.constant 1 : index
    %c2_80 = arith.constant 2 : index
    %c0_81 = arith.constant 0 : index
    %c0_82 = arith.constant 0 : index
    %79 = vector.load %arg2[%c1_79, %c2_80, %c0_81, %c0_82] : memref<2x5x16x8xf32, #tpu.memory_space<vmem>>, vector<1x1x16x8xf32>
    %80 = vector.shape_cast %79 : vector<1x1x16x8xf32> to vector<16x8xf32>
    %c0_83 = arith.constant 0 : index
    %c2_84 = arith.constant 2 : index
    %81 = vector.load %arg8[%c0_83, %c2_84] : memref<8x14xf32, #tpu.memory_space<vmem>>, vector<8x10xf32>
    %cst_85 = arith.constant dense<0.000000e+00> : vector<16x10xf32>
    %82 = tpu.matmul %80, %81, %cst_85 {dimension_numbers = #tpu.dot_dimension_numbers<[1], [0], [0], [1], [0, 0, 1, 1], [], []>} : vector<16x8xf32>, vector<8x10xf32>, vector<16x10xf32> -> vector<16x10xf32>
    %83 = arith.addf %78, %82 : vector<16x10xf32>
    %c1_86 = arith.constant 1 : index
    %c3_87 = arith.constant 3 : index
    %c0_88 = arith.constant 0 : index
    %c0_89 = arith.constant 0 : index
    %84 = vector.load %arg2[%c1_86, %c3_87, %c0_88, %c0_89] : memref<2x5x16x8xf32, #tpu.memory_space<vmem>>, vector<1x1x16x8xf32>
    %85 = vector.shape_cast %84 : vector<1x1x16x8xf32> to vector<16x8xf32>
    %c0_90 = arith.constant 0 : index
    %c3_91 = arith.constant 3 : index
    %86 = vector.load %arg8[%c0_90, %c3_91] : memref<8x14xf32, #tpu.memory_space<vmem>>, vector<8x10xf32>
    %cst_92 = arith.constant dense<0.000000e+00> : vector<16x10xf32>
    %87 = tpu.matmul %85, %86, %cst_92 {dimension_numbers = #tpu.dot_dimension_numbers<[1], [0], [0], [1], [0, 0, 1, 1], [], []>} : vector<16x8xf32>, vector<8x10xf32>, vector<16x10xf32> -> vector<16x10xf32>
    %88 = arith.addf %83, %87 : vector<16x10xf32>
    %c1_93 = arith.constant 1 : index
    %c4_94 = arith.constant 4 : index
    %c0_95 = arith.constant 0 : index
    %c0_96 = arith.constant 0 : index
    %89 = vector.load %arg2[%c1_93, %c4_94, %c0_95, %c0_96] : memref<2x5x16x8xf32, #tpu.memory_space<vmem>>, vector<1x1x16x8xf32>
    %90 = vector.shape_cast %89 : vector<1x1x16x8xf32> to vector<16x8xf32>
    %c0_97 = arith.constant 0 : index
    %c4_98 = arith.constant 4 : index
    %91 = vector.load %arg8[%c0_97, %c4_98] : memref<8x14xf32, #tpu.memory_space<vmem>>, vector<8x10xf32>
    %cst_99 = arith.constant dense<0.000000e+00> : vector<16x10xf32>
    %92 = tpu.matmul %90, %91, %cst_99 {dimension_numbers = #tpu.dot_dimension_numbers<[1], [0], [0], [1], [0, 0, 1, 1], [], []>} : vector<16x8xf32>, vector<8x10xf32>, vector<16x10xf32> -> vector<16x10xf32>
    %93 = arith.addf %88, %92 : vector<16x10xf32>
    %c1_100 = arith.constant 1 : index
    %c0_101 = arith.constant 0 : index
    %c0_102 = arith.constant 0 : index
    %94 = vector.load %arg3[%c1_100, %c0_101, %c0_102] : memref<2x16x1xf32, #tpu.memory_space<vmem>>, vector<1x16x1xf32>
    %95 = vector.shape_cast %94 : vector<1x16x1xf32> to vector<16x1xf32>
    %96 = vector.broadcast %95 : vector<16x1xf32> to vector<16x10xf32>
    %97 = arith.addf %93, %96 : vector<16x10xf32>
    %cst_103 = arith.constant 0.000000e+00 : f32
    %98 = vector.broadcast %cst_103 : f32 to vector<16x10xf32>
    %99 = arith.cmpf ogt, %97, %98 : vector<16x10xf32>
    %cst_104 = arith.constant 0.00999999977 : f32
    %100 = vector.broadcast %cst_104 : f32 to vector<16x10xf32>
    %101 = arith.mulf %100, %97 : vector<16x10xf32>
    %102 = arith.select %99, %97, %101 : vector<16x10xi1>, vector<16x10xf32>
    %c1_105 = arith.constant 1 : index
    %c0_106 = arith.constant 0 : index
    %c0_107 = arith.constant 0 : index
    %c0_108 = arith.constant 0 : index
    %103 = vector.load %arg4[%c1_105, %c0_106, %c0_107, %c0_108] : memref<2x3x8x16xf32, #tpu.memory_space<vmem>>, vector<1x1x8x16xf32>
    %104 = vector.shape_cast %103 : vector<1x1x8x16xf32> to vector<8x16xf32>
    %105 = vector.extract_strided_slice %102 {offsets = [0, 0], sizes = [16, 8], strides = [1, 1]} : vector<16x10xf32> to vector<16x8xf32>
    %cst_109 = arith.constant dense<0.000000e+00> : vector<8x8xf32>
    %106 = tpu.matmul %104, %105, %cst_109 {dimension_numbers = #tpu.dot_dimension_numbers<[1], [0], [0], [1], [0, 0, 1, 1], [], []>} : vector<8x16xf32>, vector<16x8xf32>, vector<8x8xf32> -> vector<8x8xf32>
    %c1_110 = arith.constant 1 : index
    %c1_111 = arith.constant 1 : index
    %c0_112 = arith.constant 0 : index
    %c0_113 = arith.constant 0 : index
    %107 = vector.load %arg4[%c1_110, %c1_111, %c0_112, %c0_113] : memref<2x3x8x16xf32, #tpu.memory_space<vmem>>, vector<1x1x8x16xf32>
    %108 = vector.shape_cast %107 : vector<1x1x8x16xf32> to vector<8x16xf32>
    %109 = vector.extract_strided_slice %102 {offsets = [0, 1], sizes = [16, 8], strides = [1, 1]} : vector<16x10xf32> to vector<16x8xf32>
    %cst_114 = arith.constant dense<0.000000e+00> : vector<8x8xf32>
    %110 = tpu.matmul %108, %109, %cst_114 {dimension_numbers = #tpu.dot_dimension_numbers<[1], [0], [0], [1], [0, 0, 1, 1], [], []>} : vector<8x16xf32>, vector<16x8xf32>, vector<8x8xf32> -> vector<8x8xf32>
    %111 = arith.addf %106, %110 : vector<8x8xf32>
    %c1_115 = arith.constant 1 : index
    %c2_116 = arith.constant 2 : index
    %c0_117 = arith.constant 0 : index
    %c0_118 = arith.constant 0 : index
    %112 = vector.load %arg4[%c1_115, %c2_116, %c0_117, %c0_118] : memref<2x3x8x16xf32, #tpu.memory_space<vmem>>, vector<1x1x8x16xf32>
    %113 = vector.shape_cast %112 : vector<1x1x8x16xf32> to vector<8x16xf32>
    %114 = vector.extract_strided_slice %102 {offsets = [0, 2], sizes = [16, 8], strides = [1, 1]} : vector<16x10xf32> to vector<16x8xf32>
    %cst_119 = arith.constant dense<0.000000e+00> : vector<8x8xf32>
    %115 = tpu.matmul %113, %114, %cst_119 {dimension_numbers = #tpu.dot_dimension_numbers<[1], [0], [0], [1], [0, 0, 1, 1], [], []>} : vector<8x16xf32>, vector<16x8xf32>, vector<8x8xf32> -> vector<8x8xf32>
    %116 = arith.addf %111, %115 : vector<8x8xf32>
    %c1_120 = arith.constant 1 : index
    %c0_121 = arith.constant 0 : index
    %c0_122 = arith.constant 0 : index
    %117 = vector.load %arg5[%c1_120, %c0_121, %c0_122] : memref<2x8x1xf32, #tpu.memory_space<vmem>>, vector<1x8x1xf32>
    %118 = vector.shape_cast %117 : vector<1x8x1xf32> to vector<8x1xf32>
    %119 = vector.broadcast %118 : vector<8x1xf32> to vector<8x8xf32>
    %120 = arith.addf %116, %119 : vector<8x8xf32>
    %121 = math.tanh %120 : vector<8x8xf32>
    %c0_123 = arith.constant 0 : index
    %c3_124 = arith.constant 3 : index
    %122 = vector.load %arg8[%c0_123, %c3_124] : memref<8x14xf32, #tpu.memory_space<vmem>>, vector<8x8xf32>
    %123 = vector.extract_strided_slice %122 {offsets = [0, 0], sizes = [4, 8], strides = [1, 1]} : vector<8x8xf32> to vector<4x8xf32>
    %124 = vector.extract_strided_slice %121 {offsets = [0, 0], sizes = [4, 8], strides = [1, 1]} : vector<8x8xf32> to vector<4x8xf32>
    %125 = arith.addf %123, %124 : vector<4x8xf32>
    %c0_125 = arith.constant 0 : index
    %c0_126 = arith.constant 0 : index
    %c0_127 = arith.constant 0 : index
    %126 = vector.load %arg6[%c0_125, %c0_126, %c0_127] : memref<1x4x8xf32, #tpu.memory_space<vmem>>, vector<1x4x8xf32>
    %127 = vector.shape_cast %126 : vector<1x4x8xf32> to vector<4x8xf32>
    %128 = vector.shape_cast %125 : vector<4x8xf32> to vector<1x4x8xf32>
    tpu.vector_store %arg6[%c0_125, %c0_126, %c0_127], %128 {strides = array<i32>} : memref<1x4x8xf32, #tpu.memory_space<vmem>>, vector<1x4x8xf32>,
    %129 = vector.extract_strided_slice %122 {offsets = [4, 0], sizes = [4, 8], strides = [1, 1]} : vector<8x8xf32> to vector<4x8xf32>
    %130 = vector.extract_strided_slice %121 {offsets = [4, 0], sizes = [4, 8], strides = [1, 1]} : vector<8x8xf32> to vector<4x8xf32>
    %131 = arith.subf %129, %130 : vector<4x8xf32>
    %c0_128 = arith.constant 0 : index
    %c0_129 = arith.constant 0 : index
    %c0_130 = arith.constant 0 : index
    %132 = vector.load %arg7[%c0_128, %c0_129, %c0_130] : memref<1x4x8xf32, #tpu.memory_space<vmem>>, vector<1x4x8xf32>
    %133 = vector.shape_cast %132 : vector<1x4x8xf32> to vector<4x8xf32>
    %134 = vector.shape_cast %131 : vector<4x8xf32> to vector<1x4x8xf32>
    tpu.vector_store %arg7[%c0_128, %c0_129, %c0_130], %134 {strides = array<i32>} : memref<1x4x8xf32, #tpu.memory_space<vmem>>, vector<1x4x8xf32>,
    return
  }
  func.func @transform_0(%arg0: i32) -> (i32, i32, i32) {
    %c0_i32 = arith.constant 0 : i32
    %c0_i32_0 = arith.constant 0 : i32
    %c0_i32_1 = arith.constant 0 : i32
    return %arg0, %c0_i32, %c0_i32_0 : i32, i32, i32
  }
  func.func @transform_1(%arg0: i32) -> (i32, i32, i32, i32) {
    %c0_i32 = arith.constant 0 : i32
    %c0_i32_0 = arith.constant 0 : i32
    %c0_i32_1 = arith.constant 0 : i32
    %c0_i32_2 = arith.constant 0 : i32
    %c0_i32_3 = arith.constant 0 : i32
    return %c0_i32, %c0_i32_0, %c0_i32_1, %c0_i32_2 : i32, i32, i32, i32
  }
  func.func @transform_2(%arg0: i32) -> (i32, i32, i32) {
    %c0_i32 = arith.constant 0 : i32
    %c0_i32_0 = arith.constant 0 : i32
    %c0_i32_1 = arith.constant 0 : i32
    %c0_i32_2 = arith.constant 0 : i32
    return %c0_i32, %c0_i32_0, %c0_i32_1 : i32, i32, i32
  }
  func.func @transform_3(%arg0: i32) -> (i32, i32, i32, i32) {
    %c0_i32 = arith.constant 0 : i32
    %c0_i32_0 = arith.constant 0 : i32
    %c0_i32_1 = arith.constant 0 : i32
    %c0_i32_2 = arith.constant 0 : i32
    %c0_i32_3 = arith.constant 0 : i32
    return %c0_i32, %c0_i32_0, %c0_i32_1, %c0_i32_2 : i32, i32, i32, i32
  }
  func.func @transform_4(%arg0: i32) -> (i32, i32, i32) {
    %c0_i32 = arith.constant 0 : i32
    %c0_i32_0 = arith.constant 0 : i32
    %c0_i32_1 = arith.constant 0 : i32
    %c0_i32_2 = arith.constant 0 : i32
    return %c0_i32, %c0_i32_0, %c0_i32_1 : i32, i32, i32
  }
  func.func @transform_5(%arg0: i32) -> (i32, i32, i32) {
    %c0_i32 = arith.constant 0 : i32
    %c0_i32_0 = arith.constant 0 : i32
    %c0_i32_1 = arith.constant 0 : i32
    return %arg0, %c0_i32, %c0_i32_0 : i32, i32, i32
  }
  func.func @transform_6(%arg0: i32) -> (i32, i32, i32) {
    %c0_i32 = arith.constant 0 : i32
    %c0_i32_0 = arith.constant 0 : i32
    %c0_i32_1 = arith.constant 0 : i32
    return %arg0, %c0_i32, %c0_i32_0 : i32, i32, i32
  }
}

</mosaic_0001>

<llo_original>
// kernel: tpu_custom_call.1
$region0: #{tpu_custom_call.1}
  #allocation0 [shape = 'u32[]', space=smem, size = 0x4, offset = 0x4, fixed_abs, tag = 'smem constant byte address 0x4 - core index']
  #allocation1 [shape = 'u32[144,128]{1,0:T(1,128)}', space=vmem, size = 0x12000, scoped, tag = 'internal scratch']
  #allocation2 [shape = 'f32[8,14]{1,0:T(8,128)}', space=vmem, size = 0x1000, scoped, tag = 'scratch operand']
  %s0 = inlined_call_operand.vmem [shape: f32[2,8,14], index: 0, kind: input, shape index: {}]
  %s1 = inlined_call_operand.vmem [shape: f32[2,5,16,8], index: 1, kind: input, shape index: {}]
  %s2 = inlined_call_operand.vmem [shape: f32[2,16,1], index: 2, kind: input, shape index: {}]
  %s3 = inlined_call_operand.vmem [shape: f32[2,3,8,16], index: 3, kind: input, shape index: {}]
  %s4 = inlined_call_operand.vmem [shape: f32[2,8,1], index: 4, kind: input, shape index: {}]
  %s5 = inlined_call_operand.hbm [shape: f32[2,4,8], index: 5, kind: output, shape index: {0}]
  %s6 = inlined_call_operand.hbm [shape: f32[2,4,8], index: 6, kind: output, shape index: {1}]
  %7 = xla_tuple %s5, %s6
  %s8 = sld [smem:[#allocation0]]
  $region61: #{tpu_custom_call.1} parent=0
    _
  %s10 = ssub.s32 1, %s8
  %s11 = scalar_select 0, %s10, %s8
  $region1: #{tpu_custom_call.1} parent=0
    #allocation3 [shape = 'u8[4096]{0}', space=vmem, size = 0x1000, scoped, tag = 'output window, operand 0']
    #allocation4 [shape = 's32[2]{0}', space=sflag, size = 0x8, scoped, tag = 'scoped memory for tpu_custom_call.1']
    #allocation5 [shape = 'u8[4096]{0}', space=vmem, size = 0x1000, scoped, tag = 'output window, operand 1']
    #allocation6 [shape = 's32[2]{0}', space=sflag, size = 0x8, scoped, tag = 'scoped memory for tpu_custom_call.1']
    %12 = vsyncpa [#allocation4], 0
    %s13 = scalar_lea.sflag [#allocation4], 1
    %14 = vsyncpa %s13, 0
    %15 = vsyncpa [#allocation6], 0
    %s16 = scalar_lea.sflag [#allocation6], 1
    %17 = vsyncpa %s16, 0
    loop: start=0, step=1, limit=4
    $region2: #{tpu_custom_call.1} parent=1 // loop_pre_header
      _
    $region3: #{tpu_custom_call.1} parent=1 // loop_header
      %s19 = sphi 0, %s23
      %p20 = scmp.ge.s32.totalorder %s19, 4
      %s29 = sphi 0, %s31
      %s32 = sphi 0, %s29
      %s33 = sphi 0, %s32
      %s49 = sphi 0, %s33
      %s53 = sphi 0, %s53
      %s55 = sphi 0, %s53
      %s56 = sphi 0, %s55
      %s70 = sphi 0, %s56
      %s74 = sphi 0, %s74
      %s76 = sphi 0, %s74
      %s77 = sphi 0, %s76
      %s91 = sphi 0, %s77
      %s95 = sphi 0, %s95
      %s97 = sphi 0, %s95
      %s98 = sphi 0, %s97
      %s112 = sphi 0, %s98
      %s116 = sphi 0, %s116
      %s118 = sphi 0, %s116
      %s119 = sphi 0, %s118
      %s133 = sphi 0, %s119
      %s139 = sphi 0, %s141
      %s142 = sphi 0, %s139
      %s143 = sphi 0, %s142
      %s159 = sphi 0, %s143
      %s165 = sphi 0, %s167
      %s168 = sphi 0, %s165
      %s169 = sphi 0, %s168
      %s185 = sphi 0, %s169
    $region4: #{tpu_custom_call.1} parent=1 // loop_header_branch
      %22 = sbr.rel (%p20) target = $region8
    $region5: #{tpu_custom_call.1} parent=1 // loop_body
      %s24 = ssub.s32 %s19, 1
      %s25 = ssub.s32 %s19, 2
      %s26 = sadd.s32 %s19, 1
      %s27 = ssub.s32 %s19, %s26
      %p28 = scmp.eq.s32.totalorder %s27, 0
      %s30 = sadd.s32 %s29, 1
      %s31 = scalar_select %p28, %s29, %s30
      %p34 = pneg %p28
      %p35 = scmp.eq.s32.totalorder %s19, 1
      %p36 = por %p34, %p35
      %p37 = scmp.ne.s32.totalorder %s29, %s32
      %p38 = scmp.eq.s32.totalorder %s19, 0
      %p39 = por %p37, %p38
      %p40 = scmp.ne.s32.totalorder %s29, %s32
      %p41 = scmp.eq.s32.totalorder %s24, 1
      %p42 = por %p40, %p41
      %p43 = scmp.ne.s32.totalorder %s32, %s33
      %p44 = scmp.eq.s32.totalorder %s24, 0
      %p45 = por %p43, %p44
      %p46 = scmp.ne.s32.totalorder %s32, %s33
      %p47 = scmp.eq.s32.totalorder %s25, 1
      %p48 = por %p46, %p47
      %p50 = scmp.ne.s32.totalorder %s33, %s49
      %p51 = scmp.eq.s32.totalorder %s25, 0
      %p52 = por %p50, %p51
      %s54 = sadd.s32 %s53, 1
      %p57 = scmp.eq.s32.totalorder %s19, 1
      %p58 = scmp.ne.s32.totalorder %s53, %s55
      %p59 = scmp.eq.s32.totalorder %s19, 0
      %p60 = por %p58, %p59
      %p61 = scmp.ne.s32.totalorder %s53, %s55
      %p62 = scmp.eq.s32.totalorder %s24, 1
      %p63 = por %p61, %p62
      %p64 = scmp.ne.s32.totalorder %s55, %s56
      %p65 = scmp.eq.s32.totalorder %s24, 0
      %p66 = por %p64, %p65
      %p67 = scmp.ne.s32.totalorder %s55, %s56
      %p68 = scmp.eq.s32.totalorder %s25, 1
      %p69 = por %p67, %p68
      %p71 = scmp.ne.s32.totalorder %s56, %s70
      %p72 = scmp.eq.s32.totalorder %s25, 0
      %p73 = por %p71, %p72
      %s75 = sadd.s32 %s74, 1
      %p78 = scmp.eq.s32.totalorder %s19, 1
      %p79 = scmp.ne.s32.totalorder %s74, %s76
      %p80 = scmp.eq.s32.totalorder %s19, 0
      %p81 = por %p79, %p80
      %p82 = scmp.ne.s32.totalorder %s74, %s76
      %p83 = scmp.eq.s32.totalorder %s24, 1
      %p84 = por %p82, %p83
      %p85 = scmp.ne.s32.totalorder %s76, %s77
      %p86 = scmp.eq.s32.totalorder %s24, 0
      %p87 = por %p85, %p86
      %p88 = scmp.ne.s32.totalorder %s76, %s77
      %p89 = scmp.eq.s32.totalorder %s25, 1
      %p90 = por %p88, %p89
      %p92 = scmp.ne.s32.totalorder %s77, %s91
      %p93 = scmp.eq.s32.totalorder %s25, 0
      %p94 = por %p92, %p93
      %s96 = sadd.s32 %s95, 1
      %p99 = scmp.eq.s32.totalorder %s19, 1
      %p100 = scmp.ne.s32.totalorder %s95, %s97
      %p101 = scmp.eq.s32.totalorder %s19, 0
      %p102 = por %p100, %p101
      %p103 = scmp.ne.s32.totalorder %s95, %s97
      %p104 = scmp.eq.s32.totalorder %s24, 1
      %p105 = por %p103, %p104
      %p106 = scmp.ne.s32.totalorder %s97, %s98
      %p107 = scmp.eq.s32.totalorder %s24, 0
      %p108 = por %p106, %p107
      %p109 = scmp.ne.s32.totalorder %s97, %s98
      %p110 = scmp.eq.s32.totalorder %s25, 1
      %p111 = por %p109, %p110
      %p113 = scmp.ne.s32.totalorder %s98, %s112
      %p114 = scmp.eq.s32.totalorder %s25, 0
      %p115 = por %p113, %p114
      %s117 = sadd.s32 %s116, 1
      %p120 = scmp.eq.s32.totalorder %s19, 1
      %p121 = scmp.ne.s32.totalorder %s116, %s118
      %p122 = scmp.eq.s32.totalorder %s19, 0
      %p123 = por %p121, %p122
      %p124 = scmp.ne.s32.totalorder %s116, %s118
      %p125 = scmp.eq.s32.totalorder %s24, 1
      %p126 = por %p124, %p125
      %p127 = scmp.ne.s32.totalorder %s118, %s119
      %p128 = scmp.eq.s32.totalorder %s24, 0
      %p129 = por %p127, %p128
      %p130 = scmp.ne.s32.totalorder %s118, %s119
      %p131 = scmp.eq.s32.totalorder %s25, 1
      %p132 = por %p130, %p131
      %p134 = scmp.ne.s32.totalorder %s119, %s133
      %p135 = scmp.eq.s32.totalorder %s25, 0
      %p136 = por %p134, %p135
      %s137 = ssub.s32 %s19, %s26
      %p138 = scmp.eq.s32.totalorder %s137, 0
      %s140 = sadd.s32 %s139, 1
      %s141 = scalar_select %p138, %s139, %s140
      %p144 = pneg %p138
      %p145 = scmp.eq.s32.totalorder %s19, 1
      %p146 = por %p144, %p145
      %p147 = scmp.ne.s32.totalorder %s139, %s142
      %p148 = scmp.eq.s32.totalorder %s19, 0
      %p149 = por %p147, %p148
      %p150 = scmp.ne.s32.totalorder %s139, %s142
      %p151 = scmp.eq.s32.totalorder %s24, 1
      %p152 = por %p150, %p151
      %p153 = scmp.ne.s32.totalorder %s142, %s143
      %p154 = scmp.eq.s32.totalorder %s24, 0
      %p155 = por %p153, %p154
      %p156 = scmp.ne.s32.totalorder %s142, %s143
      %p157 = scmp.eq.s32.totalorder %s25, 1
      %p158 = por %p156, %p157
      %p160 = scmp.ne.s32.totalorder %s143, %s159
      %p161 = scmp.eq.s32.totalorder %s25, 0
      %p162 = por %p160, %p161
      %s163 = ssub.s32 %s19, %s26
      %p164 = scmp.eq.s32.totalorder %s163, 0
      %s166 = sadd.s32 %s165, 1
      %s167 = scalar_select %p164, %s165, %s166
      %p170 = pneg %p164
      %p171 = scmp.eq.s32.totalorder %s19, 1
      %p172 = por %p170, %p171
      %p173 = scmp.ne.s32.totalorder %s165, %s168
      %p174 = scmp.eq.s32.totalorder %s19, 0
      %p175 = por %p173, %p174
      %p176 = scmp.ne.s32.totalorder %s165, %s168
      %p177 = scmp.eq.s32.totalorder %s24, 1
      %p178 = por %p176, %p177
      %p179 = scmp.ne.s32.totalorder %s168, %s169
      %p180 = scmp.eq.s32.totalorder %s24, 0
      %p181 = por %p179, %p180
      %p182 = scmp.ne.s32.totalorder %s168, %s169
      %p183 = scmp.eq.s32.totalorder %s25, 1
      %p184 = por %p182, %p183
      %p186 = scmp.ne.s32.totalorder %s169, %s185
      %p187 = scmp.eq.s32.totalorder %s25, 0
      %p188 = por %p186, %p187
      %p189 = scmp.le.s32.totalorder 1, %s19
      %p190 = scmp.lt.s32.totalorder %s19, 3
      %p191 = pnand %p189, %p190
      %p192 = pneg %p191
      // Predicated region
      $region9: #{tpu_custom_call.1} parent=5 // pred_check
        _
      $region10: #{tpu_custom_call.1} parent=5 // pred_check_branch
        %194 = sbr.rel (%p191) target = $region12
      $region11: #{tpu_custom_call.1} parent=5 // pred_region
        %s195 = ssub.s32 %s19, 1
        // Predicated region
        $region13: #{tpu_custom_call.1} parent=11 // pred_check
          %p196 = pneg %p66
        $region14: #{tpu_custom_call.1} parent=11 // pred_check_branch
          %198 = sbr.rel (%p196) target = $region16
        $region15: #{tpu_custom_call.1} parent=11 // pred_region
          _
        $region16: #{tpu_custom_call.1} parent=11 // pred_fallthru
          _
        // Predicated region
        $region17: #{tpu_custom_call.1} parent=11 // pred_check
          %p199 = pneg %p87
        $region18: #{tpu_custom_call.1} parent=11 // pred_check_branch
          %201 = sbr.rel (%p199) target = $region20
        $region19: #{tpu_custom_call.1} parent=11 // pred_region
          _
        $region20: #{tpu_custom_call.1} parent=11 // pred_fallthru
          _
        // Predicated region
        $region21: #{tpu_custom_call.1} parent=11 // pred_check
          %p202 = pneg %p108
        $region22: #{tpu_custom_call.1} parent=11 // pred_check_branch
          %204 = sbr.rel (%p202) target = $region24
        $region23: #{tpu_custom_call.1} parent=11 // pred_region
          _
        $region24: #{tpu_custom_call.1} parent=11 // pred_fallthru
          _
        // Predicated region
        $region25: #{tpu_custom_call.1} parent=11 // pred_check
          %p205 = pneg %p129
        $region26: #{tpu_custom_call.1} parent=11 // pred_check_branch
          %207 = sbr.rel (%p205) target = $region28
        $region27: #{tpu_custom_call.1} parent=11 // pred_region
          _
        $region28: #{tpu_custom_call.1} parent=11 // pred_fallthru
          _
      $region12: #{tpu_custom_call.1} parent=5 // pred_fallthru
        _
      %p208 = scmp.lt.s32.totalorder %s19, 2
      // Predicated region
      $region29: #{tpu_custom_call.1} parent=5 // pred_check
        %p209 = pneg %p208
      $region30: #{tpu_custom_call.1} parent=5 // pred_check_branch
        %211 = sbr.rel (%p209) target = $region32
      $region31: #{tpu_custom_call.1} parent=5 // pred_region
        // Predicated region
        $region33: #{tpu_custom_call.1} parent=31 // pred_check
          %p212 = pneg %p39
        $region34: #{tpu_custom_call.1} parent=31 // pred_check_branch
          %214 = sbr.rel (%p212) target = $region36
        $region35: #{tpu_custom_call.1} parent=31 // pred_region
          %p215 = scmp.lt.s32.totalorder %s19, 1
          %s216 = scalar_select %p215, %s19, 1
          %s217 = smul.addr %s216, 8
          %s218 = scalar_lea.vmem %s0, %s217
        $region36: #{tpu_custom_call.1} parent=31 // pred_fallthru
          _
      $region32: #{tpu_custom_call.1} parent=5 // pred_fallthru
        _
      %p219 = scmp.le.s32.totalorder 1, %s19
      %p220 = scmp.lt.s32.totalorder %s19, 3
      %p221 = pnand %p219, %p220
      %p222 = pneg %p221
      // Predicated region
      $region37: #{tpu_custom_call.1} parent=5 // pred_check
        _
      $region38: #{tpu_custom_call.1} parent=5 // pred_check_branch
        %224 = sbr.rel (%p221) target = $region40
      $region39: #{tpu_custom_call.1} parent=5 // pred_region
        %s225 = ssub.s32 %s19, 1
        %p226 = scmp.lt.s32.totalorder %s24, 1
        %s227 = scalar_select %p226, %s24, 1
        %s228 = smul.addr %s227, 8
        %s229 = scalar_lea.vmem %s0, %s228
        %p230 = pneg %p45
        %p231 = pneg %p42
        %p232 = pneg %p66
        %p233 = pneg %p63
        %p234 = pneg %p87
        %p235 = pneg %p84
        %p236 = pneg %p108
        %p237 = pneg %p105
        %p238 = pneg %p129
        %p239 = pneg %p126
        %p240 = pneg %p155
        %p241 = pneg %p152
        %s242 = sand.u32 %s142, 1
        %s243 = scalar_lea.sflag [#allocation4], %s242
        %s244 = sand.u32 %s142, 1
        %s245 = smul.addr %s244, 4
        %s246 = scalar_lea.vmem [#allocation3], %s245
        %p247 = pneg %p181
        %p248 = pneg %p178
        %s249 = sand.u32 %s168, 1
        %s250 = scalar_lea.sflag [#allocation6], %s249
        %s251 = sand.u32 %s168, 1
        %s252 = smul.addr %s251, 4
        %s253 = scalar_lea.vmem [#allocation5], %s252
        %p254 = scmp.lt.s32.totalorder %s24, 1
        %s255 = scalar_select %p254, %s24, 1
        %s256 = smul.addr %s255, 8
        %s257 = scalar_lea.vmem %s0, %s256
        %v258 = vld [vmem:[%s1] sm:$0xff]
        %v259 = vld [vmem:[%s1 + $0x8] sm:$0xff]
        %v260 = vld [vmem:[%s257] sm:$0xff]
        %s261 = scalar_lea.vmem %s1, 16
        %v262 = vld [vmem:[%s261] sm:$0xff]
        %v263 = vld [vmem:[%s261 + $0x8] sm:$0xff]
        %265 = vrot.lane.b32.xlu0 %v260, 127
        %v266 = vpop.permute.xlu0 %265
        %vm268 = vcmask 64512
        %v270 = vsel %vm268, %v262, 0
        %v273 = vsel %vm268, %v263, 0
        %275 = vmatprep.subr.mxu0 0.0
        %276 = vmatpush1.msra.mxu0 0.0
        %277 = vmatprep.subr.mxu0 0.0
        %278 = vmatpush1.msra.mxu0 0.0
        %279 = vmatprep.subr.mxu0 0.0
        %280 = vmatpush1.msra.mxu0 0.0
        %281 = vmatprep.subr.mxu0 0.0
        %282 = vmatpush1.msra.mxu0 0.0
        %283 = vmatprep.subr.mxu0 0.0
        %284 = vmatpush1.msra.mxu0 0.0
        %285 = vmatprep.subr.mxu0 0.0
        %286 = vmatpush1.msra.mxu0 0.0
        %287 = vmatprep.subr.mxu0 0.0
        %288 = vmatpush1.msra.mxu0 0.0
        %289 = vmatprep.subr.mxu0 0.0
        %290 = vmatpush1.msra.mxu0 0.0
        %291 = vmatprep.subr.mxu0 0.0
        %292 = vmatpush1.msra.mxu0 0.0
        %293 = vmatprep.subr.mxu0 0.0
        %294 = vmatpush1.msra.mxu0 0.0
        %295 = vmatprep.subr.mxu0 0.0
        %296 = vmatpush1.msra.mxu0 0.0
        %297 = vmatprep.subr.mxu0 0.0
        %298 = vmatpush1.msra.mxu0 0.0
        %299 = vmatprep.subr.mxu0 0.0
        %300 = vmatpush1.msra.mxu0 0.0
        %301 = vmatprep.subr.mxu0 0.0
        %302 = vmatpush1.msra.mxu0 0.0
        %303 = vmatprep.subr.mxu0 0.0
        %304 = vmatpush1.msra.mxu0 0.0
        %305 = vmatprep.subr.mxu0 0.0
        %306 = vmatpush1.msra.mxu0 %v266
        %307 = vmatprep.subr.mxu0 0.0
        %308 = vmatpush2.msra.mxu0 0.0
        %309 = vmatprep.subr.mxu0 0.0
        %310 = vmatpush2.msra.mxu0 0.0
        %311 = vmatprep.subr.mxu0 0.0
        %312 = vmatpush2.msra.mxu0 0.0
        %313 = vmatprep.subr.mxu0 0.0
        %314 = vmatpush2.msra.mxu0 0.0
        %315 = vmatprep.subr.mxu0 0.0
        %316 = vmatpush2.msra.mxu0 0.0
        %317 = vmatprep.subr.mxu0 0.0
        %318 = vmatpush2.msra.mxu0 0.0
        %319 = vmatprep.subr.mxu0 0.0
        %320 = vmatpush2.msra.mxu0 0.0
        %321 = vmatprep.subr.mxu0 0.0
        %322 = vmatpush2.msra.mxu0 0.0
        %323 = vmatprep.subr.mxu0 0.0
        %324 = vmatpush2.msra.mxu0 0.0
        %325 = vmatprep.subr.mxu0 0.0
        %326 = vmatpush2.msra.mxu0 0.0
        %327 = vmatprep.subr.mxu0 0.0
        %328 = vmatpush2.msra.mxu0 0.0
        %329 = vmatprep.subr.mxu0 0.0
        %330 = vmatpush2.msra.mxu0 0.0
        %331 = vmatprep.subr.mxu0 0.0
        %332 = vmatpush2.msra.mxu0 0.0
        %333 = vmatprep.subr.mxu0 0.0
        %334 = vmatpush2.msra.mxu0 0.0
        %335 = vmatprep.subr.mxu0 0.0
        %336 = vmatpush2.msra.mxu0 0.0
        %337 = vmatprep.subr.mxu0 0.0
        %338 = vmatpush2.msra.mxu0 0.0
        %339 = vmatprep.mubr.f32.mxu0 0.0
        %340 = vmatmul.mubr.f32.gmra.mxu0 %v270
        %v341 = vpop.f32.mrf.mxu0
        %v342 = vadd.f32 0.0, %v341
        %v343 = vpop.f32.mrf.mxu0
        %344 = vmatprep.mubr.f32.mxu0 0.0
        %345 = vmatmul.mubr.f32.gmra.mxu0 %v273
        %v346 = vpop.f32.mrf.mxu0
        %v347 = vadd.f32 0.0, %v346
        %v348 = vpop.f32.mrf.mxu0
        %349 = vdwg.mxu0
        %v351 = vsel %vm268, %v258, 0
        %v354 = vsel %vm268, %v259, 0
        %356 = vmatprep.subr.mxu0 0.0
        %357 = vmatpush1.msra.mxu0 0.0
        %358 = vmatprep.subr.mxu0 0.0
        %359 = vmatpush1.msra.mxu0 0.0
        %360 = vmatprep.subr.mxu0 0.0
        %361 = vmatpush1.msra.mxu0 0.0
        %362 = vmatprep.subr.mxu0 0.0
        %363 = vmatpush1.msra.mxu0 0.0
        %364 = vmatprep.subr.mxu0 0.0
        %365 = vmatpush1.msra.mxu0 0.0
        %366 = vmatprep.subr.mxu0 0.0
        %367 = vmatpush1.msra.mxu0 0.0
        %368 = vmatprep.subr.mxu0 0.0
        %369 = vmatpush1.msra.mxu0 0.0
        %370 = vmatprep.subr.mxu0 0.0
        %371 = vmatpush1.msra.mxu0 0.0
        %372 = vmatprep.subr.mxu0 0.0
        %373 = vmatpush1.msra.mxu0 0.0
        %374 = vmatprep.subr.mxu0 0.0
        %375 = vmatpush1.msra.mxu0 0.0
        %376 = vmatprep.subr.mxu0 0.0
        %377 = vmatpush1.msra.mxu0 0.0
        %378 = vmatprep.subr.mxu0 0.0
        %379 = vmatpush1.msra.mxu0 0.0
        %380 = vmatprep.subr.mxu0 0.0
        %381 = vmatpush1.msra.mxu0 0.0
        %382 = vmatprep.subr.mxu0 0.0
        %383 = vmatpush1.msra.mxu0 0.0
        %384 = vmatprep.subr.mxu0 0.0
        %385 = vmatpush1.msra.mxu0 0.0
        %386 = vmatprep.subr.mxu0 0.0
        %387 = vmatpush1.msra.mxu0 %v260
        %388 = vmatprep.subr.mxu0 0.0
        %389 = vmatpush2.msra.mxu0 0.0
        %390 = vmatprep.subr.mxu0 0.0
        %391 = vmatpush2.msra.mxu0 0.0
        %392 = vmatprep.subr.mxu0 0.0
        %393 = vmatpush2.msra.mxu0 0.0
        %394 = vmatprep.subr.mxu0 0.0
        %395 = vmatpush2.msra.mxu0 0.0
        %396 = vmatprep.subr.mxu0 0.0
        %397 = vmatpush2.msra.mxu0 0.0
        %398 = vmatprep.subr.mxu0 0.0
        %399 = vmatpush2.msra.mxu0 0.0
        %400 = vmatprep.subr.mxu0 0.0
        %401 = vmatpush2.msra.mxu0 0.0
        %402 = vmatprep.subr.mxu0 0.0
        %403 = vmatpush2.msra.mxu0 0.0
        %404 = vmatprep.subr.mxu0 0.0
        %405 = vmatpush2.msra.mxu0 0.0
        %406 = vmatprep.subr.mxu0 0.0
        %407 = vmatpush2.msra.mxu0 0.0
        %408 = vmatprep.subr.mxu0 0.0
        %409 = vmatpush2.msra.mxu0 0.0
        %410 = vmatprep.subr.mxu0 0.0
        %411 = vmatpush2.msra.mxu0 0.0
        %412 = vmatprep.subr.mxu0 0.0
        %413 = vmatpush2.msra.mxu0 0.0
        %414 = vmatprep.subr.mxu0 0.0
        %415 = vmatpush2.msra.mxu0 0.0
        %416 = vmatprep.subr.mxu0 0.0
        %417 = vmatpush2.msra.mxu0 0.0
        %418 = vmatprep.subr.mxu0 0.0
        %419 = vmatpush2.msra.mxu0 0.0
        %420 = vmatprep.mubr.f32.mxu0 0.0
        %421 = vmatmul.mubr.f32.gmra.mxu0 %v351
        %v422 = vpop.f32.mrf.mxu0
        %v423 = vadd.f32 %v342, %v422
        %v424 = vpop.f32.mrf.mxu0
        %425 = vmatprep.mubr.f32.mxu0 0.0
        %426 = vmatmul.mubr.f32.gmra.mxu0 %v354
        %v427 = vpop.f32.mrf.mxu0
        %v428 = vadd.f32 %v347, %v427
        %v429 = vpop.f32.mrf.mxu0
        %430 = vdwg.mxu0
        %s431 = scalar_lea.vmem %s1, 32
        %v432 = vld [vmem:[%s431] sm:$0xff]
        %v433 = vld [vmem:[%s431 + $0x8] sm:$0xff]
        %434 = vrot.lane.b32.xlu0 %v260, 126
        %v435 = vpop.permute.xlu0 %434
        %v438 = vsel %vm268, %v432, 0
        %v441 = vsel %vm268, %v433, 0
        %443 = vmatprep.subr.mxu0 0.0
        %444 = vmatpush1.msra.mxu0 0.0
        %445 = vmatprep.subr.mxu0 0.0
        %446 = vmatpush1.msra.mxu0 0.0
        %447 = vmatprep.subr.mxu0 0.0
        %448 = vmatpush1.msra.mxu0 0.0
        %449 = vmatprep.subr.mxu0 0.0
        %450 = vmatpush1.msra.mxu0 0.0
        %451 = vmatprep.subr.mxu0 0.0
        %452 = vmatpush1.msra.mxu0 0.0
        %453 = vmatprep.subr.mxu0 0.0
        %454 = vmatpush1.msra.mxu0 0.0
        %455 = vmatprep.subr.mxu0 0.0
        %456 = vmatpush1.msra.mxu0 0.0
        %457 = vmatprep.subr.mxu0 0.0
        %458 = vmatpush1.msra.mxu0 0.0
        %459 = vmatprep.subr.mxu0 0.0
        %460 = vmatpush1.msra.mxu0 0.0
        %461 = vmatprep.subr.mxu0 0.0
        %462 = vmatpush1.msra.mxu0 0.0
        %463 = vmatprep.subr.mxu0 0.0
        %464 = vmatpush1.msra.mxu0 0.0
        %465 = vmatprep.subr.mxu0 0.0
        %466 = vmatpush1.msra.mxu0 0.0
        %467 = vmatprep.subr.mxu0 0.0
        %468 = vmatpush1.msra.mxu0 0.0
        %469 = vmatprep.subr.mxu0 0.0
        %470 = vmatpush1.msra.mxu0 0.0
        %471 = vmatprep.subr.mxu0 0.0
        %472 = vmatpush1.msra.mxu0 0.0
        %473 = vmatprep.subr.mxu0 0.0
        %474 = vmatpush1.msra.mxu0 %v435
        %475 = vmatprep.subr.mxu0 0.0
        %476 = vmatpush2.msra.mxu0 0.0
        %477 = vmatprep.subr.mxu0 0.0
        %478 = vmatpush2.msra.mxu0 0.0
        %479 = vmatprep.subr.mxu0 0.0
        %480 = vmatpush2.msra.mxu0 0.0
        %481 = vmatprep.subr.mxu0 0.0
        %482 = vmatpush2.msra.mxu0 0.0
        %483 = vmatprep.subr.mxu0 0.0
        %484 = vmatpush2.msra.mxu0 0.0
        %485 = vmatprep.subr.mxu0 0.0
        %486 = vmatpush2.msra.mxu0 0.0
        %487 = vmatprep.subr.mxu0 0.0
        %488 = vmatpush2.msra.mxu0 0.0
        %489 = vmatprep.subr.mxu0 0.0
        %490 = vmatpush2.msra.mxu0 0.0
        %491 = vmatprep.subr.mxu0 0.0
        %492 = vmatpush2.msra.mxu0 0.0
        %493 = vmatprep.subr.mxu0 0.0
        %494 = vmatpush2.msra.mxu0 0.0
        %495 = vmatprep.subr.mxu0 0.0
        %496 = vmatpush2.msra.mxu0 0.0
        %497 = vmatprep.subr.mxu0 0.0
        %498 = vmatpush2.msra.mxu0 0.0
        %499 = vmatprep.subr.mxu0 0.0
        %500 = vmatpush2.msra.mxu0 0.0
        %501 = vmatprep.subr.mxu0 0.0
        %502 = vmatpush2.msra.mxu0 0.0
        %503 = vmatprep.subr.mxu0 0.0
        %504 = vmatpush2.msra.mxu0 0.0
        %505 = vmatprep.subr.mxu0 0.0
        %506 = vmatpush2.msra.mxu0 0.0
        %507 = vmatprep.mubr.f32.mxu0 0.0
        %508 = vmatmul.mubr.f32.gmra.mxu0 %v438
        %v509 = vpop.f32.mrf.mxu0
        %v510 = vadd.f32 0.0, %v509
        %v511 = vpop.f32.mrf.mxu0
        %512 = vmatprep.mubr.f32.mxu0 0.0
        %513 = vmatmul.mubr.f32.gmra.mxu0 %v441
        %v514 = vpop.f32.mrf.mxu0
        %v515 = vadd.f32 0.0, %v514
        %v516 = vpop.f32.mrf.mxu0
        %517 = vdwg.mxu0
        %v518 = vadd.f32 %v423, %v510
        %v519 = vadd.f32 %v428, %v515
        %s520 = scalar_lea.vmem %s1, 48
        %v521 = vld [vmem:[%s520] sm:$0xff]
        %v522 = vld [vmem:[%s520 + $0x8] sm:$0xff]
        %523 = vrot.lane.b32.xlu0 %v260, 125
        %v524 = vpop.permute.xlu0 %523
        %v527 = vsel %vm268, %v521, 0
        %v530 = vsel %vm268, %v522, 0
        %532 = vmatprep.subr.mxu0 0.0
        %533 = vmatpush1.msra.mxu0 0.0
        %534 = vmatprep.subr.mxu0 0.0
        %535 = vmatpush1.msra.mxu0 0.0
        %536 = vmatprep.subr.mxu0 0.0
        %537 = vmatpush1.msra.mxu0 0.0
        %538 = vmatprep.subr.mxu0 0.0
        %539 = vmatpush1.msra.mxu0 0.0
        %540 = vmatprep.subr.mxu0 0.0
        %541 = vmatpush1.msra.mxu0 0.0
        %542 = vmatprep.subr.mxu0 0.0
        %543 = vmatpush1.msra.mxu0 0.0
        %544 = vmatprep.subr.mxu0 0.0
        %545 = vmatpush1.msra.mxu0 0.0
        %546 = vmatprep.subr.mxu0 0.0
        %547 = vmatpush1.msra.mxu0 0.0
        %548 = vmatprep.subr.mxu0 0.0
        %549 = vmatpush1.msra.mxu0 0.0
        %550 = vmatprep.subr.mxu0 0.0
        %551 = vmatpush1.msra.mxu0 0.0
        %552 = vmatprep.subr.mxu0 0.0
        %553 = vmatpush1.msra.mxu0 0.0
        %554 = vmatprep.subr.mxu0 0.0
        %555 = vmatpush1.msra.mxu0 0.0
        %556 = vmatprep.subr.mxu0 0.0
        %557 = vmatpush1.msra.mxu0 0.0
        %558 = vmatprep.subr.mxu0 0.0
        %559 = vmatpush1.msra.mxu0 0.0
        %560 = vmatprep.subr.mxu0 0.0
        %561 = vmatpush1.msra.mxu0 0.0
        %562 = vmatprep.subr.mxu0 0.0
        %563 = vmatpush1.msra.mxu0 %v524
        %564 = vmatprep.subr.mxu0 0.0
        %565 = vmatpush2.msra.mxu0 0.0
        %566 = vmatprep.subr.mxu0 0.0
        %567 = vmatpush2.msra.mxu0 0.0
        %568 = vmatprep.subr.mxu0 0.0
        %569 = vmatpush2.msra.mxu0 0.0
        %570 = vmatprep.subr.mxu0 0.0
        %571 = vmatpush2.msra.mxu0 0.0
        %572 = vmatprep.subr.mxu0 0.0
        %573 = vmatpush2.msra.mxu0 0.0
        %574 = vmatprep.subr.mxu0 0.0
        %575 = vmatpush2.msra.mxu0 0.0
        %576 = vmatprep.subr.mxu0 0.0
        %577 = vmatpush2.msra.mxu0 0.0
        %578 = vmatprep.subr.mxu0 0.0
        %579 = vmatpush2.msra.mxu0 0.0
        %580 = vmatprep.subr.mxu0 0.0
        %581 = vmatpush2.msra.mxu0 0.0
        %582 = vmatprep.subr.mxu0 0.0
        %583 = vmatpush2.msra.mxu0 0.0
        %584 = vmatprep.subr.mxu0 0.0
        %585 = vmatpush2.msra.mxu0 0.0
        %586 = vmatprep.subr.mxu0 0.0
        %587 = vmatpush2.msra.mxu0 0.0
        %588 = vmatprep.subr.mxu0 0.0
        %589 = vmatpush2.msra.mxu0 0.0
        %590 = vmatprep.subr.mxu0 0.0
        %591 = vmatpush2.msra.mxu0 0.0
        %592 = vmatprep.subr.mxu0 0.0
        %593 = vmatpush2.msra.mxu0 0.0
        %594 = vmatprep.subr.mxu0 0.0
        %595 = vmatpush2.msra.mxu0 0.0
        %596 = vmatprep.mubr.f32.mxu0 0.0
        %597 = vmatmul.mubr.f32.gmra.mxu0 %v527
        %v598 = vpop.f32.mrf.mxu0
        %v599 = vadd.f32 0.0, %v598
        %v600 = vpop.f32.mrf.mxu0
        %601 = vmatprep.mubr.f32.mxu0 0.0
        %602 = vmatmul.mubr.f32.gmra.mxu0 %v530
        %v603 = vpop.f32.mrf.mxu0
        %v604 = vadd.f32 0.0, %v603
        %v605 = vpop.f32.mrf.mxu0
        %606 = vdwg.mxu0
        %v607 = vadd.f32 %v518, %v599
        %v608 = vadd.f32 %v519, %v604
        %s609 = scalar_lea.vmem %s1, 64
        %v610 = vld [vmem:[%s609] sm:$0xff]
        %v611 = vld [vmem:[%s609 + $0x8] sm:$0xff]
        %612 = vrot.lane.b32.xlu0 %v260, 124
        %v613 = vpop.permute.xlu0 %612
        %v616 = vsel %vm268, %v610, 0
        %v619 = vsel %vm268, %v611, 0
        %621 = vmatprep.subr.mxu0 0.0
        %622 = vmatpush1.msra.mxu0 0.0
        %623 = vmatprep.subr.mxu0 0.0
        %624 = vmatpush1.msra.mxu0 0.0
        %625 = vmatprep.subr.mxu0 0.0
        %626 = vmatpush1.msra.mxu0 0.0
        %627 = vmatprep.subr.mxu0 0.0
        %628 = vmatpush1.msra.mxu0 0.0
        %629 = vmatprep.subr.mxu0 0.0
        %630 = vmatpush1.msra.mxu0 0.0
        %631 = vmatprep.subr.mxu0 0.0
        %632 = vmatpush1.msra.mxu0 0.0
        %633 = vmatprep.subr.mxu0 0.0
        %634 = vmatpush1.msra.mxu0 0.0
        %635 = vmatprep.subr.mxu0 0.0
        %636 = vmatpush1.msra.mxu0 0.0
        %637 = vmatprep.subr.mxu0 0.0
        %638 = vmatpush1.msra.mxu0 0.0
        %639 = vmatprep.subr.mxu0 0.0
        %640 = vmatpush1.msra.mxu0 0.0
        %641 = vmatprep.subr.mxu0 0.0
        %642 = vmatpush1.msra.mxu0 0.0
        %643 = vmatprep.subr.mxu0 0.0
        %644 = vmatpush1.msra.mxu0 0.0
        %645 = vmatprep.subr.mxu0 0.0
        %646 = vmatpush1.msra.mxu0 0.0
        %647 = vmatprep.subr.mxu0 0.0
        %648 = vmatpush1.msra.mxu0 0.0
        %649 = vmatprep.subr.mxu0 0.0
        %650 = vmatpush1.msra.mxu0 0.0
        %651 = vmatprep.subr.mxu0 0.0
        %652 = vmatpush1.msra.mxu0 %v613
        %653 = vmatprep.subr.mxu0 0.0
        %654 = vmatpush2.msra.mxu0 0.0
        %655 = vmatprep.subr.mxu0 0.0
        %656 = vmatpush2.msra.mxu0 0.0
        %657 = vmatprep.subr.mxu0 0.0
        %658 = vmatpush2.msra.mxu0 0.0
        %659 = vmatprep.subr.mxu0 0.0
        %660 = vmatpush2.msra.mxu0 0.0
        %661 = vmatprep.subr.mxu0 0.0
        %662 = vmatpush2.msra.mxu0 0.0
        %663 = vmatprep.subr.mxu0 0.0
        %664 = vmatpush2.msra.mxu0 0.0
        %665 = vmatprep.subr.mxu0 0.0
        %666 = vmatpush2.msra.mxu0 0.0
        %667 = vmatprep.subr.mxu0 0.0
        %668 = vmatpush2.msra.mxu0 0.0
        %669 = vmatprep.subr.mxu0 0.0
        %670 = vmatpush2.msra.mxu0 0.0
        %671 = vmatprep.subr.mxu0 0.0
        %672 = vmatpush2.msra.mxu0 0.0
        %673 = vmatprep.subr.mxu0 0.0
        %674 = vmatpush2.msra.mxu0 0.0
        %675 = vmatprep.subr.mxu0 0.0
        %676 = vmatpush2.msra.mxu0 0.0
        %677 = vmatprep.subr.mxu0 0.0
        %678 = vmatpush2.msra.mxu0 0.0
        %679 = vmatprep.subr.mxu0 0.0
        %680 = vmatpush2.msra.mxu0 0.0
        %681 = vmatprep.subr.mxu0 0.0
        %682 = vmatpush2.msra.mxu0 0.0
        %683 = vmatprep.subr.mxu0 0.0
        %684 = vmatpush2.msra.mxu0 0.0
        %685 = vmatprep.mubr.f32.mxu0 0.0
        %686 = vmatmul.mubr.f32.gmra.mxu0 %v616
        %v687 = vpop.f32.mrf.mxu0
        %v688 = vadd.f32 0.0, %v687
        %v689 = vpop.f32.mrf.mxu0
        %690 = vmatprep.mubr.f32.mxu0 0.0
        %691 = vmatmul.mubr.f32.gmra.mxu0 %v619
        %v692 = vpop.f32.mrf.mxu0
        %v693 = vadd.f32 0.0, %v692
        %v694 = vpop.f32.mrf.mxu0
        %695 = vdwg.mxu0
        %v696 = vadd.f32 %v607, %v688
        %v697 = vadd.f32 %v608, %v693
        %v698 = vld [vmem:[%s2] sm:$0xff]
        %v699 = vld [vmem:[%s2 + $0x8] sm:$0xff]
        %701 = vset.pattern.permute.xlu0 0
        %702 = vperm.xlu0 %701, %v698
        %v703 = vpop.permute.xlu0 %702
        %706 = vset.pattern.permute.xlu0 0
        %707 = vperm.xlu0 %706, %v699
        %v708 = vpop.permute.xlu0 %707
        %v710 = vadd.f32 %v696, %v703
        %v711 = vadd.f32 %v697, %v708
        %vm712 = vcmp.gt.f32.partialorder %v710, 0.0
        %vm713 = vcmp.gt.f32.partialorder %v711, 0.0
        %v714 = vmul.f32 %v710, 0.01
        %v715 = vmul.f32 %v711, 0.01
        %v716 = vsel %vm712, %v710, %v714
        %v717 = vsel %vm713, %v711, %v715
        %v718 = vld [vmem:[%s3] sm:$0xff]
        %s719 = scalar_lea.vmem %s3, 8
        %v720 = vld [vmem:[%s719] sm:$0xff]
        %723 = vrot.lane.b32.xlu0 %v716, 127
        %v724 = vpop.permute.xlu0 %723
        %725 = vrot.lane.b32.xlu0 %v717, 127
        %v726 = vpop.permute.xlu0 %725
        %vm729 = vcmask 130048
        %v731 = vsel %vm729, %v720, 0
        %733 = vmatprep.subr.mxu0 0.0
        %734 = vmatpush1.msra.mxu0 0.0
        %735 = vmatprep.subr.mxu0 0.0
        %736 = vmatpush1.msra.mxu0 0.0
        %737 = vmatprep.subr.mxu0 0.0
        %738 = vmatpush1.msra.mxu0 0.0
        %739 = vmatprep.subr.mxu0 0.0
        %740 = vmatpush1.msra.mxu0 0.0
        %741 = vmatprep.subr.mxu0 0.0
        %742 = vmatpush1.msra.mxu0 0.0
        %743 = vmatprep.subr.mxu0 0.0
        %744 = vmatpush1.msra.mxu0 0.0
        %745 = vmatprep.subr.mxu0 0.0
        %746 = vmatpush1.msra.mxu0 0.0
        %747 = vmatprep.subr.mxu0 0.0
        %748 = vmatpush1.msra.mxu0 0.0
        %749 = vmatprep.subr.mxu0 0.0
        %750 = vmatpush1.msra.mxu0 0.0
        %751 = vmatprep.subr.mxu0 0.0
        %752 = vmatpush1.msra.mxu0 0.0
        %753 = vmatprep.subr.mxu0 0.0
        %754 = vmatpush1.msra.mxu0 0.0
        %755 = vmatprep.subr.mxu0 0.0
        %756 = vmatpush1.msra.mxu0 0.0
        %757 = vmatprep.subr.mxu0 0.0
        %758 = vmatpush1.msra.mxu0 0.0
        %759 = vmatprep.subr.mxu0 0.0
        %760 = vmatpush1.msra.mxu0 0.0
        %761 = vmatprep.subr.mxu0 0.0
        %762 = vmatpush1.msra.mxu0 %v726
        %763 = vmatprep.subr.mxu0 0.0
        %764 = vmatpush1.msra.mxu0 %v724
        %765 = vmatprep.subr.mxu0 0.0
        %766 = vmatpush2.msra.mxu0 0.0
        %767 = vmatprep.subr.mxu0 0.0
        %768 = vmatpush2.msra.mxu0 0.0
        %769 = vmatprep.subr.mxu0 0.0
        %770 = vmatpush2.msra.mxu0 0.0
        %771 = vmatprep.subr.mxu0 0.0
        %772 = vmatpush2.msra.mxu0 0.0
        %773 = vmatprep.subr.mxu0 0.0
        %774 = vmatpush2.msra.mxu0 0.0
        %775 = vmatprep.subr.mxu0 0.0
        %776 = vmatpush2.msra.mxu0 0.0
        %777 = vmatprep.subr.mxu0 0.0
        %778 = vmatpush2.msra.mxu0 0.0
        %779 = vmatprep.subr.mxu0 0.0
        %780 = vmatpush2.msra.mxu0 0.0
        %781 = vmatprep.subr.mxu0 0.0
        %782 = vmatpush2.msra.mxu0 0.0
        %783 = vmatprep.subr.mxu0 0.0
        %784 = vmatpush2.msra.mxu0 0.0
        %785 = vmatprep.subr.mxu0 0.0
        %786 = vmatpush2.msra.mxu0 0.0
        %787 = vmatprep.subr.mxu0 0.0
        %788 = vmatpush2.msra.mxu0 0.0
        %789 = vmatprep.subr.mxu0 0.0
        %790 = vmatpush2.msra.mxu0 0.0
        %791 = vmatprep.subr.mxu0 0.0
        %792 = vmatpush2.msra.mxu0 0.0
        %793 = vmatprep.subr.mxu0 0.0
        %794 = vmatpush2.msra.mxu0 0.0
        %795 = vmatprep.subr.mxu0 0.0
        %796 = vmatpush2.msra.mxu0 0.0
        %797 = vmatprep.mubr.f32.mxu0 0.0
        %798 = vmatmul.mubr.f32.gmra.mxu0 %v731
        %v799 = vpop.f32.mrf.mxu0
        %v800 = vadd.f32 0.0, %v799
        %v801 = vpop.f32.mrf.mxu0
        %802 = vdwg.mxu0
        %v804 = vsel %vm729, %v718, 0
        %806 = vmatprep.subr.mxu0 0.0
        %807 = vmatpush1.msra.mxu0 0.0
        %808 = vmatprep.subr.mxu0 0.0
        %809 = vmatpush1.msra.mxu0 0.0
        %810 = vmatprep.subr.mxu0 0.0
        %811 = vmatpush1.msra.mxu0 0.0
        %812 = vmatprep.subr.mxu0 0.0
        %813 = vmatpush1.msra.mxu0 0.0
        %814 = vmatprep.subr.mxu0 0.0
        %815 = vmatpush1.msra.mxu0 0.0
        %816 = vmatprep.subr.mxu0 0.0
        %817 = vmatpush1.msra.mxu0 0.0
        %818 = vmatprep.subr.mxu0 0.0
        %819 = vmatpush1.msra.mxu0 0.0
        %820 = vmatprep.subr.mxu0 0.0
        %821 = vmatpush1.msra.mxu0 0.0
        %822 = vmatprep.subr.mxu0 0.0
        %823 = vmatpush1.msra.mxu0 0.0
        %824 = vmatprep.subr.mxu0 0.0
        %825 = vmatpush1.msra.mxu0 0.0
        %826 = vmatprep.subr.mxu0 0.0
        %827 = vmatpush1.msra.mxu0 0.0
        %828 = vmatprep.subr.mxu0 0.0
        %829 = vmatpush1.msra.mxu0 0.0
        %830 = vmatprep.subr.mxu0 0.0
        %831 = vmatpush1.msra.mxu0 0.0
        %832 = vmatprep.subr.mxu0 0.0
        %833 = vmatpush1.msra.mxu0 0.0
        %834 = vmatprep.subr.mxu0 0.0
        %835 = vmatpush1.msra.mxu0 %v717
        %836 = vmatprep.subr.mxu0 0.0
        %837 = vmatpush1.msra.mxu0 %v716
        %838 = vmatprep.subr.mxu0 0.0
        %839 = vmatpush2.msra.mxu0 0.0
        %840 = vmatprep.subr.mxu0 0.0
        %841 = vmatpush2.msra.mxu0 0.0
        %842 = vmatprep.subr.mxu0 0.0
        %843 = vmatpush2.msra.mxu0 0.0
        %844 = vmatprep.subr.mxu0 0.0
        %845 = vmatpush2.msra.mxu0 0.0
        %846 = vmatprep.subr.mxu0 0.0
        %847 = vmatpush2.msra.mxu0 0.0
        %848 = vmatprep.subr.mxu0 0.0
        %849 = vmatpush2.msra.mxu0 0.0
        %850 = vmatprep.subr.mxu0 0.0
        %851 = vmatpush2.msra.mxu0 0.0
        %852 = vmatprep.subr.mxu0 0.0
        %853 = vmatpush2.msra.mxu0 0.0
        %854 = vmatprep.subr.mxu0 0.0
        %855 = vmatpush2.msra.mxu0 0.0
        %856 = vmatprep.subr.mxu0 0.0
        %857 = vmatpush2.msra.mxu0 0.0
        %858 = vmatprep.subr.mxu0 0.0
        %859 = vmatpush2.msra.mxu0 0.0
        %860 = vmatprep.subr.mxu0 0.0
        %861 = vmatpush2.msra.mxu0 0.0
        %862 = vmatprep.subr.mxu0 0.0
        %863 = vmatpush2.msra.mxu0 0.0
        %864 = vmatprep.subr.mxu0 0.0
        %865 = vmatpush2.msra.mxu0 0.0
        %866 = vmatprep.subr.mxu0 0.0
        %867 = vmatpush2.msra.mxu0 0.0
        %868 = vmatprep.subr.mxu0 0.0
        %869 = vmatpush2.msra.mxu0 0.0
        %870 = vmatprep.mubr.f32.mxu0 0.0
        %871 = vmatmul.mubr.f32.gmra.mxu0 %v804
        %v872 = vpop.f32.mrf.mxu0
        %v873 = vadd.f32 %v800, %v872
        %v874 = vpop.f32.mrf.mxu0
        %875 = vdwg.mxu0
        %s876 = scalar_lea.vmem %s3, 16
        %v877 = vld [vmem:[%s876] sm:$0xff]
        %878 = vrot.lane.b32.xlu0 %v716, 126
        %v879 = vpop.permute.xlu0 %878
        %880 = vrot.lane.b32.xlu0 %v717, 126
        %v881 = vpop.permute.xlu0 %880
        %v885 = vsel %vm729, %v877, 0
        %887 = vmatprep.subr.mxu0 0.0
        %888 = vmatpush1.msra.mxu0 0.0
        %889 = vmatprep.subr.mxu0 0.0
        %890 = vmatpush1.msra.mxu0 0.0
        %891 = vmatprep.subr.mxu0 0.0
        %892 = vmatpush1.msra.mxu0 0.0
        %893 = vmatprep.subr.mxu0 0.0
        %894 = vmatpush1.msra.mxu0 0.0
        %895 = vmatprep.subr.mxu0 0.0
        %896 = vmatpush1.msra.mxu0 0.0
        %897 = vmatprep.subr.mxu0 0.0
        %898 = vmatpush1.msra.mxu0 0.0
        %899 = vmatprep.subr.mxu0 0.0
        %900 = vmatpush1.msra.mxu0 0.0
        %901 = vmatprep.subr.mxu0 0.0
        %902 = vmatpush1.msra.mxu0 0.0
        %903 = vmatprep.subr.mxu0 0.0
        %904 = vmatpush1.msra.mxu0 0.0
        %905 = vmatprep.subr.mxu0 0.0
        %906 = vmatpush1.msra.mxu0 0.0
        %907 = vmatprep.subr.mxu0 0.0
        %908 = vmatpush1.msra.mxu0 0.0
        %909 = vmatprep.subr.mxu0 0.0
        %910 = vmatpush1.msra.mxu0 0.0
        %911 = vmatprep.subr.mxu0 0.0
        %912 = vmatpush1.msra.mxu0 0.0
        %913 = vmatprep.subr.mxu0 0.0
        %914 = vmatpush1.msra.mxu0 0.0
        %915 = vmatprep.subr.mxu0 0.0
        %916 = vmatpush1.msra.mxu0 %v881
        %917 = vmatprep.subr.mxu0 0.0
        %918 = vmatpush1.msra.mxu0 %v879
        %919 = vmatprep.subr.mxu0 0.0
        %920 = vmatpush2.msra.mxu0 0.0
        %921 = vmatprep.subr.mxu0 0.0
        %922 = vmatpush2.msra.mxu0 0.0
        %923 = vmatprep.subr.mxu0 0.0
        %924 = vmatpush2.msra.mxu0 0.0
        %925 = vmatprep.subr.mxu0 0.0
        %926 = vmatpush2.msra.mxu0 0.0
        %927 = vmatprep.subr.mxu0 0.0
        %928 = vmatpush2.msra.mxu0 0.0
        %929 = vmatprep.subr.mxu0 0.0
        %930 = vmatpush2.msra.mxu0 0.0
        %931 = vmatprep.subr.mxu0 0.0
        %932 = vmatpush2.msra.mxu0 0.0
        %933 = vmatprep.subr.mxu0 0.0
        %934 = vmatpush2.msra.mxu0 0.0
        %935 = vmatprep.subr.mxu0 0.0
        %936 = vmatpush2.msra.mxu0 0.0
        %937 = vmatprep.subr.mxu0 0.0
        %938 = vmatpush2.msra.mxu0 0.0
        %939 = vmatprep.subr.mxu0 0.0
        %940 = vmatpush2.msra.mxu0 0.0
        %941 = vmatprep.subr.mxu0 0.0
        %942 = vmatpush2.msra.mxu0 0.0
        %943 = vmatprep.subr.mxu0 0.0
        %944 = vmatpush2.msra.mxu0 0.0
        %945 = vmatprep.subr.mxu0 0.0
        %946 = vmatpush2.msra.mxu0 0.0
        %947 = vmatprep.subr.mxu0 0.0
        %948 = vmatpush2.msra.mxu0 0.0
        %949 = vmatprep.subr.mxu0 0.0
        %950 = vmatpush2.msra.mxu0 0.0
        %951 = vmatprep.mubr.f32.mxu0 0.0
        %952 = vmatmul.mubr.f32.gmra.mxu0 %v885
        %v953 = vpop.f32.mrf.mxu0
        %v954 = vadd.f32 0.0, %v953
        %v955 = vpop.f32.mrf.mxu0
        %956 = vdwg.mxu0
        %v957 = vadd.f32 %v873, %v954
        %v958 = vld [vmem:[%s4] sm:$0xff]
        %960 = vset.pattern.permute.xlu0 0
        %961 = vperm.xlu0 %960, %v958
        %v962 = vpop.permute.xlu0 %961
        %v964 = vadd.f32 %v957, %v962
        %v965 = vtanh.pop %v964
        %v966 = vmul.f32 %v965, 1.442695
        %v967 = vpow.pop %v966
        %969 = vrot.lane.b32.xlu0 %v967, 3
        %v970 = vpop.permute.xlu0 %969
        %v972 = vmul.f32 %v260, %v970
        %vm973 = vcmask 89112
        %974 = vst.msk [vmem:[#allocation2] sm:$0xff] %vm973, %v972
        %976 = vset.pattern.permute.xlu0 3
        %977 = vperm.xlu0 %976, %v972
        %v978 = vpop.permute.xlu0 %977
        %vm980 = vcmask 23552
        %981 = vst.msk [vmem:[#allocation2] sm:$0xff] %vm980, %v978
        %982 = vset.pattern.permute.xlu0 10
        %983 = vperm.xlu0 %982, %v972
        %v984 = vpop.permute.xlu0 %983
        %vm986 = vcmask 113752
        %987 = vst.msk [vmem:[#allocation2] sm:$0xff] %vm986, %v984
        %s988 = scalar_lea.vmem %s1, 80
        %v989 = vld [vmem:[%s988] sm:$0xff]
        %v990 = vld [vmem:[%s988 + $0x8] sm:$0xff]
        %v991 = vld [vmem:[#allocation2] sm:$0xff]
        %s992 = scalar_lea.vmem %s1, 96
        %v993 = vld [vmem:[%s992] sm:$0xff]
        %v994 = vld [vmem:[%s992 + $0x8] sm:$0xff]
        %996 = vrot.lane.b32.xlu0 %v991, 127
        %v997 = vpop.permute.xlu0 %996
        %v1000 = vsel %vm268, %v993, 0
        %v1003 = vsel %vm268, %v994, 0
        %1005 = vmatprep.subr.mxu0 0.0
        %1006 = vmatpush1.msra.mxu0 0.0
        %1007 = vmatprep.subr.mxu0 0.0
        %1008 = vmatpush1.msra.mxu0 0.0
        %1009 = vmatprep.subr.mxu0 0.0
        %1010 = vmatpush1.msra.mxu0 0.0
        %1011 = vmatprep.subr.mxu0 0.0
        %1012 = vmatpush1.msra.mxu0 0.0
        %1013 = vmatprep.subr.mxu0 0.0
        %1014 = vmatpush1.msra.mxu0 0.0
        %1015 = vmatprep.subr.mxu0 0.0
        %1016 = vmatpush1.msra.mxu0 0.0
        %1017 = vmatprep.subr.mxu0 0.0
        %1018 = vmatpush1.msra.mxu0 0.0
        %1019 = vmatprep.subr.mxu0 0.0
        %1020 = vmatpush1.msra.mxu0 0.0
        %1021 = vmatprep.subr.mxu0 0.0
        %1022 = vmatpush1.msra.mxu0 0.0
        %1023 = vmatprep.subr.mxu0 0.0
        %1024 = vmatpush1.msra.mxu0 0.0
        %1025 = vmatprep.subr.mxu0 0.0
        %1026 = vmatpush1.msra.mxu0 0.0
        %1027 = vmatprep.subr.mxu0 0.0
        %1028 = vmatpush1.msra.mxu0 0.0
        %1029 = vmatprep.subr.mxu0 0.0
        %1030 = vmatpush1.msra.mxu0 0.0
        %1031 = vmatprep.subr.mxu0 0.0
        %1032 = vmatpush1.msra.mxu0 0.0
        %1033 = vmatprep.subr.mxu0 0.0
        %1034 = vmatpush1.msra.mxu0 0.0
        %1035 = vmatprep.subr.mxu0 0.0
        %1036 = vmatpush1.msra.mxu0 %v997
        %1037 = vmatprep.subr.mxu0 0.0
        %1038 = vmatpush2.msra.mxu0 0.0
        %1039 = vmatprep.subr.mxu0 0.0
        %1040 = vmatpush2.msra.mxu0 0.0
        %1041 = vmatprep.subr.mxu0 0.0
        %1042 = vmatpush2.msra.mxu0 0.0
        %1043 = vmatprep.subr.mxu0 0.0
        %1044 = vmatpush2.msra.mxu0 0.0
        %1045 = vmatprep.subr.mxu0 0.0
        %1046 = vmatpush2.msra.mxu0 0.0
        %1047 = vmatprep.subr.mxu0 0.0
        %1048 = vmatpush2.msra.mxu0 0.0
        %1049 = vmatprep.subr.mxu0 0.0
        %1050 = vmatpush2.msra.mxu0 0.0
        %1051 = vmatprep.subr.mxu0 0.0
        %1052 = vmatpush2.msra.mxu0 0.0
        %1053 = vmatprep.subr.mxu0 0.0
        %1054 = vmatpush2.msra.mxu0 0.0
        %1055 = vmatprep.subr.mxu0 0.0
        %1056 = vmatpush2.msra.mxu0 0.0
        %1057 = vmatprep.subr.mxu0 0.0
        %1058 = vmatpush2.msra.mxu0 0.0
        %1059 = vmatprep.subr.mxu0 0.0
        %1060 = vmatpush2.msra.mxu0 0.0
        %1061 = vmatprep.subr.mxu0 0.0
        %1062 = vmatpush2.msra.mxu0 0.0
        %1063 = vmatprep.subr.mxu0 0.0
        %1064 = vmatpush2.msra.mxu0 0.0
        %1065 = vmatprep.subr.mxu0 0.0
        %1066 = vmatpush2.msra.mxu0 0.0
        %1067 = vmatprep.subr.mxu0 0.0
        %1068 = vmatpush2.msra.mxu0 0.0
        %1069 = vmatprep.mubr.f32.mxu0 0.0
        %1070 = vmatmul.mubr.f32.gmra.mxu0 %v1000
        %v1071 = vpop.f32.mrf.mxu0
        %v1072 = vadd.f32 0.0, %v1071
        %v1073 = vpop.f32.mrf.mxu0
        %1074 = vmatprep.mubr.f32.mxu0 0.0
        %1075 = vmatmul.mubr.f32.gmra.mxu0 %v1003
        %v1076 = vpop.f32.mrf.mxu0
        %v1077 = vadd.f32 0.0, %v1076
        %v1078 = vpop.f32.mrf.mxu0
        %1079 = vdwg.mxu0
        %v1081 = vsel %vm268, %v989, 0
        %v1084 = vsel %vm268, %v990, 0
        %1086 = vmatprep.subr.mxu0 0.0
        %1087 = vmatpush1.msra.mxu0 0.0
        %1088 = vmatprep.subr.mxu0 0.0
        %1089 = vmatpush1.msra.mxu0 0.0
        %1090 = vmatprep.subr.mxu0 0.0
        %1091 = vmatpush1.msra.mxu0 0.0
        %1092 = vmatprep.subr.mxu0 0.0
        %1093 = vmatpush1.msra.mxu0 0.0
        %1094 = vmatprep.subr.mxu0 0.0
        %1095 = vmatpush1.msra.mxu0 0.0
        %1096 = vmatprep.subr.mxu0 0.0
        %1097 = vmatpush1.msra.mxu0 0.0
        %1098 = vmatprep.subr.mxu0 0.0
        %1099 = vmatpush1.msra.mxu0 0.0
        %1100 = vmatprep.subr.mxu0 0.0
        %1101 = vmatpush1.msra.mxu0 0.0
        %1102 = vmatprep.subr.mxu0 0.0
        %1103 = vmatpush1.msra.mxu0 0.0
        %1104 = vmatprep.subr.mxu0 0.0
        %1105 = vmatpush1.msra.mxu0 0.0
        %1106 = vmatprep.subr.mxu0 0.0
        %1107 = vmatpush1.msra.mxu0 0.0
        %1108 = vmatprep.subr.mxu0 0.0
        %1109 = vmatpush1.msra.mxu0 0.0
        %1110 = vmatprep.subr.mxu0 0.0
        %1111 = vmatpush1.msra.mxu0 0.0
        %1112 = vmatprep.subr.mxu0 0.0
        %1113 = vmatpush1.msra.mxu0 0.0
        %1114 = vmatprep.subr.mxu0 0.0
        %1115 = vmatpush1.msra.mxu0 0.0
        %1116 = vmatprep.subr.mxu0 0.0
        %1117 = vmatpush1.msra.mxu0 %v991
        %1118 = vmatprep.subr.mxu0 0.0
        %1119 = vmatpush2.msra.mxu0 0.0
        %1120 = vmatprep.subr.mxu0 0.0
        %1121 = vmatpush2.msra.mxu0 0.0
        %1122 = vmatprep.subr.mxu0 0.0
        %1123 = vmatpush2.msra.mxu0 0.0
        %1124 = vmatprep.subr.mxu0 0.0
        %1125 = vmatpush2.msra.mxu0 0.0
        %1126 = vmatprep.subr.mxu0 0.0
        %1127 = vmatpush2.msra.mxu0 0.0
        %1128 = vmatprep.subr.mxu0 0.0
        %1129 = vmatpush2.msra.mxu0 0.0
        %1130 = vmatprep.subr.mxu0 0.0
        %1131 = vmatpush2.msra.mxu0 0.0
        %1132 = vmatprep.subr.mxu0 0.0
        %1133 = vmatpush2.msra.mxu0 0.0
        %1134 = vmatprep.subr.mxu0 0.0
        %1135 = vmatpush2.msra.mxu0 0.0
        %1136 = vmatprep.subr.mxu0 0.0
        %1137 = vmatpush2.msra.mxu0 0.0
        %1138 = vmatprep.subr.mxu0 0.0
        %1139 = vmatpush2.msra.mxu0 0.0
        %1140 = vmatprep.subr.mxu0 0.0
        %1141 = vmatpush2.msra.mxu0 0.0
        %1142 = vmatprep.subr.mxu0 0.0
        %1143 = vmatpush2.msra.mxu0 0.0
        %1144 = vmatprep.subr.mxu0 0.0
        %1145 = vmatpush2.msra.mxu0 0.0
        %1146 = vmatprep.subr.mxu0 0.0
        %1147 = vmatpush2.msra.mxu0 0.0
        %1148 = vmatprep.subr.mxu0 0.0
        %1149 = vmatpush2.msra.mxu0 0.0
        %1150 = vmatprep.mubr.f32.mxu0 0.0
        %1151 = vmatmul.mubr.f32.gmra.mxu0 %v1081
        %v1152 = vpop.f32.mrf.mxu0
        %v1153 = vadd.f32 %v1072, %v1152
        %v1154 = vpop.f32.mrf.mxu0
        %1155 = vmatprep.mubr.f32.mxu0 0.0
        %1156 = vmatmul.mubr.f32.gmra.mxu0 %v1084
        %v1157 = vpop.f32.mrf.mxu0
        %v1158 = vadd.f32 %v1077, %v1157
        %v1159 = vpop.f32.mrf.mxu0
        %1160 = vdwg.mxu0
        %s1161 = scalar_lea.vmem %s1, 112
        %v1162 = vld [vmem:[%s1161] sm:$0xff]
        %v1163 = vld [vmem:[%s1161 + $0x8] sm:$0xff]
        %1164 = vrot.lane.b32.xlu0 %v991, 126
        %v1165 = vpop.permute.xlu0 %1164
        %v1168 = vsel %vm268, %v1162, 0
        %v1171 = vsel %vm268, %v1163, 0
        %1173 = vmatprep.subr.mxu0 0.0
        %1174 = vmatpush1.msra.mxu0 0.0
        %1175 = vmatprep.subr.mxu0 0.0
        %1176 = vmatpush1.msra.mxu0 0.0
        %1177 = vmatprep.subr.mxu0 0.0
        %1178 = vmatpush1.msra.mxu0 0.0
        %1179 = vmatprep.subr.mxu0 0.0
        %1180 = vmatpush1.msra.mxu0 0.0
        %1181 = vmatprep.subr.mxu0 0.0
        %1182 = vmatpush1.msra.mxu0 0.0
        %1183 = vmatprep.subr.mxu0 0.0
        %1184 = vmatpush1.msra.mxu0 0.0
        %1185 = vmatprep.subr.mxu0 0.0
        %1186 = vmatpush1.msra.mxu0 0.0
        %1187 = vmatprep.subr.mxu0 0.0
        %1188 = vmatpush1.msra.mxu0 0.0
        %1189 = vmatprep.subr.mxu0 0.0
        %1190 = vmatpush1.msra.mxu0 0.0
        %1191 = vmatprep.subr.mxu0 0.0
        %1192 = vmatpush1.msra.mxu0 0.0
        %1193 = vmatprep.subr.mxu0 0.0
        %1194 = vmatpush1.msra.mxu0 0.0
        %1195 = vmatprep.subr.mxu0 0.0
        %1196 = vmatpush1.msra.mxu0 0.0
        %1197 = vmatprep.subr.mxu0 0.0
        %1198 = vmatpush1.msra.mxu0 0.0
        %1199 = vmatprep.subr.mxu0 0.0
        %1200 = vmatpush1.msra.mxu0 0.0
        %1201 = vmatprep.subr.mxu0 0.0
        %1202 = vmatpush1.msra.mxu0 0.0
        %1203 = vmatprep.subr.mxu0 0.0
        %1204 = vmatpush1.msra.mxu0 %v1165
        %1205 = vmatprep.subr.mxu0 0.0
        %1206 = vmatpush2.msra.mxu0 0.0
        %1207 = vmatprep.subr.mxu0 0.0
        %1208 = vmatpush2.msra.mxu0 0.0
        %1209 = vmatprep.subr.mxu0 0.0
        %1210 = vmatpush2.msra.mxu0 0.0
        %1211 = vmatprep.subr.mxu0 0.0
        %1212 = vmatpush2.msra.mxu0 0.0
        %1213 = vmatprep.subr.mxu0 0.0
        %1214 = vmatpush2.msra.mxu0 0.0
        %1215 = vmatprep.subr.mxu0 0.0
        %1216 = vmatpush2.msra.mxu0 0.0
        %1217 = vmatprep.subr.mxu0 0.0
        %1218 = vmatpush2.msra.mxu0 0.0
        %1219 = vmatprep.subr.mxu0 0.0
        %1220 = vmatpush2.msra.mxu0 0.0
        %1221 = vmatprep.subr.mxu0 0.0
        %1222 = vmatpush2.msra.mxu0 0.0
        %1223 = vmatprep.subr.mxu0 0.0
        %1224 = vmatpush2.msra.mxu0 0.0
        %1225 = vmatprep.subr.mxu0 0.0
        %1226 = vmatpush2.msra.mxu0 0.0
        %1227 = vmatprep.subr.mxu0 0.0
        %1228 = vmatpush2.msra.mxu0 0.0
        %1229 = vmatprep.subr.mxu0 0.0
        %1230 = vmatpush2.msra.mxu0 0.0
        %1231 = vmatprep.subr.mxu0 0.0
        %1232 = vmatpush2.msra.mxu0 0.0
        %1233 = vmatprep.subr.mxu0 0.0
        %1234 = vmatpush2.msra.mxu0 0.0
        %1235 = vmatprep.subr.mxu0 0.0
        %1236 = vmatpush2.msra.mxu0 0.0
        %1237 = vmatprep.mubr.f32.mxu0 0.0
        %1238 = vmatmul.mubr.f32.gmra.mxu0 %v1168
        %v1239 = vpop.f32.mrf.mxu0
        %v1240 = vadd.f32 0.0, %v1239
        %v1241 = vpop.f32.mrf.mxu0
        %1242 = vmatprep.mubr.f32.mxu0 0.0
        %1243 = vmatmul.mubr.f32.gmra.mxu0 %v1171
        %v1244 = vpop.f32.mrf.mxu0
        %v1245 = vadd.f32 0.0, %v1244
        %v1246 = vpop.f32.mrf.mxu0
        %1247 = vdwg.mxu0
        %v1248 = vadd.f32 %v1153, %v1240
        %v1249 = vadd.f32 %v1158, %v1245
        %s1250 = scalar_lea.vmem %s1, 128
        %v1251 = vld [vmem:[%s1250] sm:$0xff]
        %v1252 = vld [vmem:[%s1250 + $0x8] sm:$0xff]
        %1253 = vrot.lane.b32.xlu0 %v991, 125
        %v1254 = vpop.permute.xlu0 %1253
        %v1257 = vsel %vm268, %v1251, 0
        %v1260 = vsel %vm268, %v1252, 0
        %1262 = vmatprep.subr.mxu0 0.0
        %1263 = vmatpush1.msra.mxu0 0.0
        %1264 = vmatprep.subr.mxu0 0.0
        %1265 = vmatpush1.msra.mxu0 0.0
        %1266 = vmatprep.subr.mxu0 0.0
        %1267 = vmatpush1.msra.mxu0 0.0
        %1268 = vmatprep.subr.mxu0 0.0
        %1269 = vmatpush1.msra.mxu0 0.0
        %1270 = vmatprep.subr.mxu0 0.0
        %1271 = vmatpush1.msra.mxu0 0.0
        %1272 = vmatprep.subr.mxu0 0.0
        %1273 = vmatpush1.msra.mxu0 0.0
        %1274 = vmatprep.subr.mxu0 0.0
        %1275 = vmatpush1.msra.mxu0 0.0
        %1276 = vmatprep.subr.mxu0 0.0
        %1277 = vmatpush1.msra.mxu0 0.0
        %1278 = vmatprep.subr.mxu0 0.0
        %1279 = vmatpush1.msra.mxu0 0.0
        %1280 = vmatprep.subr.mxu0 0.0
        %1281 = vmatpush1.msra.mxu0 0.0
        %1282 = vmatprep.subr.mxu0 0.0
        %1283 = vmatpush1.msra.mxu0 0.0
        %1284 = vmatprep.subr.mxu0 0.0
        %1285 = vmatpush1.msra.mxu0 0.0
        %1286 = vmatprep.subr.mxu0 0.0
        %1287 = vmatpush1.msra.mxu0 0.0
        %1288 = vmatprep.subr.mxu0 0.0
        %1289 = vmatpush1.msra.mxu0 0.0
        %1290 = vmatprep.subr.mxu0 0.0
        %1291 = vmatpush1.msra.mxu0 0.0
        %1292 = vmatprep.subr.mxu0 0.0
        %1293 = vmatpush1.msra.mxu0 %v1254
        %1294 = vmatprep.subr.mxu0 0.0
        %1295 = vmatpush2.msra.mxu0 0.0
        %1296 = vmatprep.subr.mxu0 0.0
        %1297 = vmatpush2.msra.mxu0 0.0
        %1298 = vmatprep.subr.mxu0 0.0
        %1299 = vmatpush2.msra.mxu0 0.0
        %1300 = vmatprep.subr.mxu0 0.0
        %1301 = vmatpush2.msra.mxu0 0.0
        %1302 = vmatprep.subr.mxu0 0.0
        %1303 = vmatpush2.msra.mxu0 0.0
        %1304 = vmatprep.subr.mxu0 0.0
        %1305 = vmatpush2.msra.mxu0 0.0
        %1306 = vmatprep.subr.mxu0 0.0
        %1307 = vmatpush2.msra.mxu0 0.0
        %1308 = vmatprep.subr.mxu0 0.0
        %1309 = vmatpush2.msra.mxu0 0.0
        %1310 = vmatprep.subr.mxu0 0.0
        %1311 = vmatpush2.msra.mxu0 0.0
        %1312 = vmatprep.subr.mxu0 0.0
        %1313 = vmatpush2.msra.mxu0 0.0
        %1314 = vmatprep.subr.mxu0 0.0
        %1315 = vmatpush2.msra.mxu0 0.0
        %1316 = vmatprep.subr.mxu0 0.0
        %1317 = vmatpush2.msra.mxu0 0.0
        %1318 = vmatprep.subr.mxu0 0.0
        %1319 = vmatpush2.msra.mxu0 0.0
        %1320 = vmatprep.subr.mxu0 0.0
        %1321 = vmatpush2.msra.mxu0 0.0
        %1322 = vmatprep.subr.mxu0 0.0
        %1323 = vmatpush2.msra.mxu0 0.0
        %1324 = vmatprep.subr.mxu0 0.0
        %1325 = vmatpush2.msra.mxu0 0.0
        %1326 = vmatprep.mubr.f32.mxu0 0.0
        %1327 = vmatmul.mubr.f32.gmra.mxu0 %v1257
        %v1328 = vpop.f32.mrf.mxu0
        %v1329 = vadd.f32 0.0, %v1328
        %v1330 = vpop.f32.mrf.mxu0
        %1331 = vmatprep.mubr.f32.mxu0 0.0
        %1332 = vmatmul.mubr.f32.gmra.mxu0 %v1260
        %v1333 = vpop.f32.mrf.mxu0
        %v1334 = vadd.f32 0.0, %v1333
        %v1335 = vpop.f32.mrf.mxu0
        %1336 = vdwg.mxu0
        %v1337 = vadd.f32 %v1248, %v1329
        %v1338 = vadd.f32 %v1249, %v1334
        %s1339 = scalar_lea.vmem %s1, 144
        %v1340 = vld [vmem:[%s1339] sm:$0xff]
        %v1341 = vld [vmem:[%s1339 + $0x8] sm:$0xff]
        %1342 = vrot.lane.b32.xlu0 %v991, 124
        %v1343 = vpop.permute.xlu0 %1342
        %v1346 = vsel %vm268, %v1340, 0
        %v1349 = vsel %vm268, %v1341, 0
        %1351 = vmatprep.subr.mxu0 0.0
        %1352 = vmatpush1.msra.mxu0 0.0
        %1353 = vmatprep.subr.mxu0 0.0
        %1354 = vmatpush1.msra.mxu0 0.0
        %1355 = vmatprep.subr.mxu0 0.0
        %1356 = vmatpush1.msra.mxu0 0.0
        %1357 = vmatprep.subr.mxu0 0.0
        %1358 = vmatpush1.msra.mxu0 0.0
        %1359 = vmatprep.subr.mxu0 0.0
        %1360 = vmatpush1.msra.mxu0 0.0
        %1361 = vmatprep.subr.mxu0 0.0
        %1362 = vmatpush1.msra.mxu0 0.0
        %1363 = vmatprep.subr.mxu0 0.0
        %1364 = vmatpush1.msra.mxu0 0.0
        %1365 = vmatprep.subr.mxu0 0.0
        %1366 = vmatpush1.msra.mxu0 0.0
        %1367 = vmatprep.subr.mxu0 0.0
        %1368 = vmatpush1.msra.mxu0 0.0
        %1369 = vmatprep.subr.mxu0 0.0
        %1370 = vmatpush1.msra.mxu0 0.0
        %1371 = vmatprep.subr.mxu0 0.0
        %1372 = vmatpush1.msra.mxu0 0.0
        %1373 = vmatprep.subr.mxu0 0.0
        %1374 = vmatpush1.msra.mxu0 0.0
        %1375 = vmatprep.subr.mxu0 0.0
        %1376 = vmatpush1.msra.mxu0 0.0
        %1377 = vmatprep.subr.mxu0 0.0
        %1378 = vmatpush1.msra.mxu0 0.0
        %1379 = vmatprep.subr.mxu0 0.0
        %1380 = vmatpush1.msra.mxu0 0.0
        %1381 = vmatprep.subr.mxu0 0.0
        %1382 = vmatpush1.msra.mxu0 %v1343
        %1383 = vmatprep.subr.mxu0 0.0
        %1384 = vmatpush2.msra.mxu0 0.0
        %1385 = vmatprep.subr.mxu0 0.0
        %1386 = vmatpush2.msra.mxu0 0.0
        %1387 = vmatprep.subr.mxu0 0.0
        %1388 = vmatpush2.msra.mxu0 0.0
        %1389 = vmatprep.subr.mxu0 0.0
        %1390 = vmatpush2.msra.mxu0 0.0
        %1391 = vmatprep.subr.mxu0 0.0
        %1392 = vmatpush2.msra.mxu0 0.0
        %1393 = vmatprep.subr.mxu0 0.0
        %1394 = vmatpush2.msra.mxu0 0.0
        %1395 = vmatprep.subr.mxu0 0.0
        %1396 = vmatpush2.msra.mxu0 0.0
        %1397 = vmatprep.subr.mxu0 0.0
        %1398 = vmatpush2.msra.mxu0 0.0
        %1399 = vmatprep.subr.mxu0 0.0
        %1400 = vmatpush2.msra.mxu0 0.0
        %1401 = vmatprep.subr.mxu0 0.0
        %1402 = vmatpush2.msra.mxu0 0.0
        %1403 = vmatprep.subr.mxu0 0.0
        %1404 = vmatpush2.msra.mxu0 0.0
        %1405 = vmatprep.subr.mxu0 0.0
        %1406 = vmatpush2.msra.mxu0 0.0
        %1407 = vmatprep.subr.mxu0 0.0
        %1408 = vmatpush2.msra.mxu0 0.0
        %1409 = vmatprep.subr.mxu0 0.0
        %1410 = vmatpush2.msra.mxu0 0.0
        %1411 = vmatprep.subr.mxu0 0.0
        %1412 = vmatpush2.msra.mxu0 0.0
        %1413 = vmatprep.subr.mxu0 0.0
        %1414 = vmatpush2.msra.mxu0 0.0
        %1415 = vmatprep.mubr.f32.mxu0 0.0
        %1416 = vmatmul.mubr.f32.gmra.mxu0 %v1346
        %v1417 = vpop.f32.mrf.mxu0
        %v1418 = vadd.f32 0.0, %v1417
        %v1419 = vpop.f32.mrf.mxu0
        %1420 = vmatprep.mubr.f32.mxu0 0.0
        %1421 = vmatmul.mubr.f32.gmra.mxu0 %v1349
        %v1422 = vpop.f32.mrf.mxu0
        %v1423 = vadd.f32 0.0, %v1422
        %v1424 = vpop.f32.mrf.mxu0
        %1425 = vdwg.mxu0
        %v1426 = vadd.f32 %v1337, %v1418
        %v1427 = vadd.f32 %v1338, %v1423
        %s1428 = scalar_lea.vmem %s2, 16
        %v1429 = vld [vmem:[%s1428] sm:$0xff]
        %v1430 = vld [vmem:[%s1428 + $0x8] sm:$0xff]
        %1432 = vset.pattern.permute.xlu0 0
        %1433 = vperm.xlu0 %1432, %v1429
        %v1434 = vpop.permute.xlu0 %1433
        %1437 = vset.pattern.permute.xlu0 0
        %1438 = vperm.xlu0 %1437, %v1430
        %v1439 = vpop.permute.xlu0 %1438
        %v1441 = vadd.f32 %v1426, %v1434
        %v1442 = vadd.f32 %v1427, %v1439
        %vm1443 = vcmp.gt.f32.partialorder %v1441, 0.0
        %vm1444 = vcmp.gt.f32.partialorder %v1442, 0.0
        %v1445 = vmul.f32 %v1441, 0.01
        %v1446 = vmul.f32 %v1442, 0.01
        %v1447 = vsel %vm1443, %v1441, %v1445
        %v1448 = vsel %vm1444, %v1442, %v1446
        %s1449 = scalar_lea.vmem %s3, 24
        %v1450 = vld [vmem:[%s1449] sm:$0xff]
        %s1451 = scalar_lea.vmem %s3, 32
        %v1452 = vld [vmem:[%s1451] sm:$0xff]
        %1455 = vrot.lane.b32.xlu0 %v1447, 127
        %v1456 = vpop.permute.xlu0 %1455
        %1457 = vrot.lane.b32.xlu0 %v1448, 127
        %v1458 = vpop.permute.xlu0 %1457
        %v1462 = vsel %vm729, %v1452, 0
        %1464 = vmatprep.subr.mxu0 0.0
        %1465 = vmatpush1.msra.mxu0 0.0
        %1466 = vmatprep.subr.mxu0 0.0
        %1467 = vmatpush1.msra.mxu0 0.0
        %1468 = vmatprep.subr.mxu0 0.0
        %1469 = vmatpush1.msra.mxu0 0.0
        %1470 = vmatprep.subr.mxu0 0.0
        %1471 = vmatpush1.msra.mxu0 0.0
        %1472 = vmatprep.subr.mxu0 0.0
        %1473 = vmatpush1.msra.mxu0 0.0
        %1474 = vmatprep.subr.mxu0 0.0
        %1475 = vmatpush1.msra.mxu0 0.0
        %1476 = vmatprep.subr.mxu0 0.0
        %1477 = vmatpush1.msra.mxu0 0.0
        %1478 = vmatprep.subr.mxu0 0.0
        %1479 = vmatpush1.msra.mxu0 0.0
        %1480 = vmatprep.subr.mxu0 0.0
        %1481 = vmatpush1.msra.mxu0 0.0
        %1482 = vmatprep.subr.mxu0 0.0
        %1483 = vmatpush1.msra.mxu0 0.0
        %1484 = vmatprep.subr.mxu0 0.0
        %1485 = vmatpush1.msra.mxu0 0.0
        %1486 = vmatprep.subr.mxu0 0.0
        %1487 = vmatpush1.msra.mxu0 0.0
        %1488 = vmatprep.subr.mxu0 0.0
        %1489 = vmatpush1.msra.mxu0 0.0
        %1490 = vmatprep.subr.mxu0 0.0
        %1491 = vmatpush1.msra.mxu0 0.0
        %1492 = vmatprep.subr.mxu0 0.0
        %1493 = vmatpush1.msra.mxu0 %v1458
        %1494 = vmatprep.subr.mxu0 0.0
        %1495 = vmatpush1.msra.mxu0 %v1456
        %1496 = vmatprep.subr.mxu0 0.0
        %1497 = vmatpush2.msra.mxu0 0.0
        %1498 = vmatprep.subr.mxu0 0.0
        %1499 = vmatpush2.msra.mxu0 0.0
        %1500 = vmatprep.subr.mxu0 0.0
        %1501 = vmatpush2.msra.mxu0 0.0
        %1502 = vmatprep.subr.mxu0 0.0
        %1503 = vmatpush2.msra.mxu0 0.0
        %1504 = vmatprep.subr.mxu0 0.0
        %1505 = vmatpush2.msra.mxu0 0.0
        %1506 = vmatprep.subr.mxu0 0.0
        %1507 = vmatpush2.msra.mxu0 0.0
        %1508 = vmatprep.subr.mxu0 0.0
        %1509 = vmatpush2.msra.mxu0 0.0
        %1510 = vmatprep.subr.mxu0 0.0
        %1511 = vmatpush2.msra.mxu0 0.0
        %1512 = vmatprep.subr.mxu0 0.0
        %1513 = vmatpush2.msra.mxu0 0.0
        %1514 = vmatprep.subr.mxu0 0.0
        %1515 = vmatpush2.msra.mxu0 0.0
        %1516 = vmatprep.subr.mxu0 0.0
        %1517 = vmatpush2.msra.mxu0 0.0
        %1518 = vmatprep.subr.mxu0 0.0
        %1519 = vmatpush2.msra.mxu0 0.0
        %1520 = vmatprep.subr.mxu0 0.0
        %1521 = vmatpush2.msra.mxu0 0.0
        %1522 = vmatprep.subr.mxu0 0.0
        %1523 = vmatpush2.msra.mxu0 0.0
        %1524 = vmatprep.subr.mxu0 0.0
        %1525 = vmatpush2.msra.mxu0 0.0
        %1526 = vmatprep.subr.mxu0 0.0
        %1527 = vmatpush2.msra.mxu0 0.0
        %1528 = vmatprep.mubr.f32.mxu0 0.0
        %1529 = vmatmul.mubr.f32.gmra.mxu0 %v1462
        %v1530 = vpop.f32.mrf.mxu0
        %v1531 = vadd.f32 0.0, %v1530
        %v1532 = vpop.f32.mrf.mxu0
        %1533 = vdwg.mxu0
        %v1535 = vsel %vm729, %v1450, 0
        %1537 = vmatprep.subr.mxu0 0.0
        %1538 = vmatpush1.msra.mxu0 0.0
        %1539 = vmatprep.subr.mxu0 0.0
        %1540 = vmatpush1.msra.mxu0 0.0
        %1541 = vmatprep.subr.mxu0 0.0
        %1542 = vmatpush1.msra.mxu0 0.0
        %1543 = vmatprep.subr.mxu0 0.0
        %1544 = vmatpush1.msra.mxu0 0.0
        %1545 = vmatprep.subr.mxu0 0.0
        %1546 = vmatpush1.msra.mxu0 0.0
        %1547 = vmatprep.subr.mxu0 0.0
        %1548 = vmatpush1.msra.mxu0 0.0
        %1549 = vmatprep.subr.mxu0 0.0
        %1550 = vmatpush1.msra.mxu0 0.0
        %1551 = vmatprep.subr.mxu0 0.0
        %1552 = vmatpush1.msra.mxu0 0.0
        %1553 = vmatprep.subr.mxu0 0.0
        %1554 = vmatpush1.msra.mxu0 0.0
        %1555 = vmatprep.subr.mxu0 0.0
        %1556 = vmatpush1.msra.mxu0 0.0
        %1557 = vmatprep.subr.mxu0 0.0
        %1558 = vmatpush1.msra.mxu0 0.0
        %1559 = vmatprep.subr.mxu0 0.0
        %1560 = vmatpush1.msra.mxu0 0.0
        %1561 = vmatprep.subr.mxu0 0.0
        %1562 = vmatpush1.msra.mxu0 0.0
        %1563 = vmatprep.subr.mxu0 0.0
        %1564 = vmatpush1.msra.mxu0 0.0
        %1565 = vmatprep.subr.mxu0 0.0
        %1566 = vmatpush1.msra.mxu0 %v1448
        %1567 = vmatprep.subr.mxu0 0.0
        %1568 = vmatpush1.msra.mxu0 %v1447
        %1569 = vmatprep.subr.mxu0 0.0
        %1570 = vmatpush2.msra.mxu0 0.0
        %1571 = vmatprep.subr.mxu0 0.0
        %1572 = vmatpush2.msra.mxu0 0.0
        %1573 = vmatprep.subr.mxu0 0.0
        %1574 = vmatpush2.msra.mxu0 0.0
        %1575 = vmatprep.subr.mxu0 0.0
        %1576 = vmatpush2.msra.mxu0 0.0
        %1577 = vmatprep.subr.mxu0 0.0
        %1578 = vmatpush2.msra.mxu0 0.0
        %1579 = vmatprep.subr.mxu0 0.0
        %1580 = vmatpush2.msra.mxu0 0.0
        %1581 = vmatprep.subr.mxu0 0.0
        %1582 = vmatpush2.msra.mxu0 0.0
        %1583 = vmatprep.subr.mxu0 0.0
        %1584 = vmatpush2.msra.mxu0 0.0
        %1585 = vmatprep.subr.mxu0 0.0
        %1586 = vmatpush2.msra.mxu0 0.0
        %1587 = vmatprep.subr.mxu0 0.0
        %1588 = vmatpush2.msra.mxu0 0.0
        %1589 = vmatprep.subr.mxu0 0.0
        %1590 = vmatpush2.msra.mxu0 0.0
        %1591 = vmatprep.subr.mxu0 0.0
        %1592 = vmatpush2.msra.mxu0 0.0
        %1593 = vmatprep.subr.mxu0 0.0
        %1594 = vmatpush2.msra.mxu0 0.0
        %1595 = vmatprep.subr.mxu0 0.0
        %1596 = vmatpush2.msra.mxu0 0.0
        %1597 = vmatprep.subr.mxu0 0.0
        %1598 = vmatpush2.msra.mxu0 0.0
        %1599 = vmatprep.subr.mxu0 0.0
        %1600 = vmatpush2.msra.mxu0 0.0
        %1601 = vmatprep.mubr.f32.mxu0 0.0
        %1602 = vmatmul.mubr.f32.gmra.mxu0 %v1535
        %v1603 = vpop.f32.mrf.mxu0
        %v1604 = vadd.f32 %v1531, %v1603
        %v1605 = vpop.f32.mrf.mxu0
        %1606 = vdwg.mxu0
        %s1607 = scalar_lea.vmem %s3, 40
        %v1608 = vld [vmem:[%s1607] sm:$0xff]
        %1609 = vrot.lane.b32.xlu0 %v1447, 126
        %v1610 = vpop.permute.xlu0 %1609
        %1611 = vrot.lane.b32.xlu0 %v1448, 126
        %v1612 = vpop.permute.xlu0 %1611
        %v1616 = vsel %vm729, %v1608, 0
        %1618 = vmatprep.subr.mxu0 0.0
        %1619 = vmatpush1.msra.mxu0 0.0
        %1620 = vmatprep.subr.mxu0 0.0
        %1621 = vmatpush1.msra.mxu0 0.0
        %1622 = vmatprep.subr.mxu0 0.0
        %1623 = vmatpush1.msra.mxu0 0.0
        %1624 = vmatprep.subr.mxu0 0.0
        %1625 = vmatpush1.msra.mxu0 0.0
        %1626 = vmatprep.subr.mxu0 0.0
        %1627 = vmatpush1.msra.mxu0 0.0
        %1628 = vmatprep.subr.mxu0 0.0
        %1629 = vmatpush1.msra.mxu0 0.0
        %1630 = vmatprep.subr.mxu0 0.0
        %1631 = vmatpush1.msra.mxu0 0.0
        %1632 = vmatprep.subr.mxu0 0.0
        %1633 = vmatpush1.msra.mxu0 0.0
        %1634 = vmatprep.subr.mxu0 0.0
        %1635 = vmatpush1.msra.mxu0 0.0
        %1636 = vmatprep.subr.mxu0 0.0
        %1637 = vmatpush1.msra.mxu0 0.0
        %1638 = vmatprep.subr.mxu0 0.0
        %1639 = vmatpush1.msra.mxu0 0.0
        %1640 = vmatprep.subr.mxu0 0.0
        %1641 = vmatpush1.msra.mxu0 0.0
        %1642 = vmatprep.subr.mxu0 0.0
        %1643 = vmatpush1.msra.mxu0 0.0
        %1644 = vmatprep.subr.mxu0 0.0
        %1645 = vmatpush1.msra.mxu0 0.0
        %1646 = vmatprep.subr.mxu0 0.0
        %1647 = vmatpush1.msra.mxu0 %v1612
        %1648 = vmatprep.subr.mxu0 0.0
        %1649 = vmatpush1.msra.mxu0 %v1610
        %1650 = vmatprep.subr.mxu0 0.0
        %1651 = vmatpush2.msra.mxu0 0.0
        %1652 = vmatprep.subr.mxu0 0.0
        %1653 = vmatpush2.msra.mxu0 0.0
        %1654 = vmatprep.subr.mxu0 0.0
        %1655 = vmatpush2.msra.mxu0 0.0
        %1656 = vmatprep.subr.mxu0 0.0
        %1657 = vmatpush2.msra.mxu0 0.0
        %1658 = vmatprep.subr.mxu0 0.0
        %1659 = vmatpush2.msra.mxu0 0.0
        %1660 = vmatprep.subr.mxu0 0.0
        %1661 = vmatpush2.msra.mxu0 0.0
        %1662 = vmatprep.subr.mxu0 0.0
        %1663 = vmatpush2.msra.mxu0 0.0
        %1664 = vmatprep.subr.mxu0 0.0
        %1665 = vmatpush2.msra.mxu0 0.0
        %1666 = vmatprep.subr.mxu0 0.0
        %1667 = vmatpush2.msra.mxu0 0.0
        %1668 = vmatprep.subr.mxu0 0.0
        %1669 = vmatpush2.msra.mxu0 0.0
        %1670 = vmatprep.subr.mxu0 0.0
        %1671 = vmatpush2.msra.mxu0 0.0
        %1672 = vmatprep.subr.mxu0 0.0
        %1673 = vmatpush2.msra.mxu0 0.0
        %1674 = vmatprep.subr.mxu0 0.0
        %1675 = vmatpush2.msra.mxu0 0.0
        %1676 = vmatprep.subr.mxu0 0.0
        %1677 = vmatpush2.msra.mxu0 0.0
        %1678 = vmatprep.subr.mxu0 0.0
        %1679 = vmatpush2.msra.mxu0 0.0
        %1680 = vmatprep.subr.mxu0 0.0
        %1681 = vmatpush2.msra.mxu0 0.0
        %1682 = vmatprep.mubr.f32.mxu0 0.0
        %1683 = vmatmul.mubr.f32.gmra.mxu0 %v1616
        %v1684 = vpop.f32.mrf.mxu0
        %v1685 = vadd.f32 0.0, %v1684
        %v1686 = vpop.f32.mrf.mxu0
        %1687 = vdwg.mxu0
        %v1688 = vadd.f32 %v1604, %v1685
        %s1689 = scalar_lea.vmem %s4, 8
        %v1690 = vld [vmem:[%s1689] sm:$0xff]
        %1692 = vset.pattern.permute.xlu0 0
        %1693 = vperm.xlu0 %1692, %v1690
        %v1694 = vpop.permute.xlu0 %1693
        %v1696 = vadd.f32 %v1688, %v1694
        %v1697 = vtanh.pop %v1696
        %1699 = vrot.lane.b32.xlu0 %v1697, 3
        %v1700 = vpop.permute.xlu0 %1699
        %v1702 = vadd.f32 %v991, %v1700
        %1704 = vrot.lane.b32.xlu0 %v1702, 125
        %v1705 = vpop.permute.xlu0 %1704
        %vm1707 = vcmask 60416
        %1708 = vst.msk [vmem:[%s246] sm:$0xf] %vm1707, %v1705
        %v1709 = vsub.f32 %v991, %v1700
        %1711 = vrot.lane.b32.xlu0 %v1709, 125
        %v1712 = vpop.permute.xlu0 %1711
        %vm1714 = vcmask 64516
        %1715 = vst.msk [vmem:[%s253 - $0x4] sm:$0xf0] %vm1714, %v1712
        %s1716 = sand.u32 %s142, 1
        %s1717 = scalar_lea.sflag [#allocation4], %s1716
        %s1718 = sand.u32 %s142, 1
        %s1719 = smul.addr %s1718, 4
        %s1720 = scalar_lea.vmem [#allocation3], %s1719
        %s1721 = sand.u32 %s168, 1
        %s1722 = scalar_lea.sflag [#allocation6], %s1721
        %s1723 = sand.u32 %s168, 1
        %s1724 = smul.addr %s1723, 4
        %s1725 = scalar_lea.vmem [#allocation5], %s1724
        // Predicated region
        $region41: #{tpu_custom_call.1} parent=39 // pred_check
          %p1726 = pneg %p152
        $region42: #{tpu_custom_call.1} parent=39 // pred_check_branch
          %1728 = sbr.rel (%p1726) target = $region44
        $region43: #{tpu_custom_call.1} parent=39 // pred_region
          %s1730 = ssub.s32 64, 64
          %1731 = vsyncadd %s1717, %s1730
          %s1732 = smul.addr %s24, 64
          %s1733 = scalar_lea.hbm %s5, %s1732
          %s1735 = sshll.u32 %s1720, 4
          %s1736 = int_to_ptr.vmem [resolvable:$true] %s1735
          %1738 = dma.vmem_to_hbm [thread:$0]  %s1736, 64, %s1733, %s1717
        $region44: #{tpu_custom_call.1} parent=39 // pred_fallthru
          _
        // Predicated region
        $region45: #{tpu_custom_call.1} parent=39 // pred_check
          %p1739 = pneg %p178
        $region46: #{tpu_custom_call.1} parent=39 // pred_check_branch
          %1741 = sbr.rel (%p1739) target = $region48
        $region47: #{tpu_custom_call.1} parent=39 // pred_region
          %s1743 = ssub.s32 64, 64
          %1744 = vsyncadd %s1722, %s1743
          %s1745 = smul.addr %s24, 64
          %s1746 = scalar_lea.hbm %s6, %s1745
          %s1748 = sshll.u32 %s1725, 4
          %s1749 = int_to_ptr.vmem [resolvable:$true] %s1748
          %1751 = dma.vmem_to_hbm [thread:$0]  %s1749, 64, %s1746, %s1722
        $region48: #{tpu_custom_call.1} parent=39 // pred_fallthru
          _
      $region40: #{tpu_custom_call.1} parent=5 // pred_fallthru
        _
      %p1752 = scmp.le.s32.totalorder 2, %s19
      // Predicated region
      $region49: #{tpu_custom_call.1} parent=5 // pred_check
        %p1753 = pneg %p1752
      $region50: #{tpu_custom_call.1} parent=5 // pred_check_branch
        %1755 = sbr.rel (%p1753) target = $region52
      $region51: #{tpu_custom_call.1} parent=5 // pred_region
        %s1756 = ssub.s32 %s19, 2
        // Predicated region
        $region53: #{tpu_custom_call.1} parent=51 // pred_check
          %p1757 = pneg %p158
        $region54: #{tpu_custom_call.1} parent=51 // pred_check_branch
          %1759 = sbr.rel (%p1757) target = $region56
        $region55: #{tpu_custom_call.1} parent=51 // pred_region
          %s1760 = sand.u32 %s143, 1
          %s1761 = scalar_lea.sflag [#allocation4], %s1760
          %s1762 = sand.u32 %s143, 1
          %s1763 = smul.addr %s1762, 4
          %s1764 = scalar_lea.vmem [#allocation3], %s1763
          %1765 = dma.done %s1761, 64
        $region56: #{tpu_custom_call.1} parent=51 // pred_fallthru
          _
        // Predicated region
        $region57: #{tpu_custom_call.1} parent=51 // pred_check
          %p1766 = pneg %p184
        $region58: #{tpu_custom_call.1} parent=51 // pred_check_branch
          %1768 = sbr.rel (%p1766) target = $region60
        $region59: #{tpu_custom_call.1} parent=51 // pred_region
          %s1769 = sand.u32 %s169, 1
          %s1770 = scalar_lea.sflag [#allocation6], %s1769
          %s1771 = sand.u32 %s169, 1
          %s1772 = smul.addr %s1771, 4
          %s1773 = scalar_lea.vmem [#allocation5], %s1772
          %1774 = dma.done %s1770, 64
        $region60: #{tpu_custom_call.1} parent=51 // pred_fallthru
          _
      $region52: #{tpu_custom_call.1} parent=5 // pred_fallthru
        _
    $region6: #{tpu_custom_call.1} parent=1 // loop_footer
      %s23 = sadd.s32 1, %s19
    $region7: #{tpu_custom_call.1} parent=1 // loop_footer_branch
      %18 = sbr.rel target = $region3
    $region8: #{tpu_custom_call.1} parent=1 // loop_exit
      _
    %1775 = vsyncpa [#allocation4], 1
    %s1776 = scalar_lea.sflag [#allocation4], 1
    %1777 = vsyncpa %s1776, 1
    %1778 = vsyncpa [#allocation6], 1
    %s1779 = scalar_lea.sflag [#allocation6], 1
    %1780 = vsyncpa %s1779, 1

</llo_original>
